<compile_context>
chip_gen: v7x
topology: tpu7x:2x2x1
jax: 0.10.0
libtpu: 0.0.40
codegen_flags: <defaults>
</compile_context>

<pallas_src>
import functools

import jax
import jax.numpy as jnp
from jax.experimental import pallas as pl
from jax.experimental.pallas import tpu as pltpu


def _round_up(x, m):
    return ((x + m - 1) // m) * m


def _pick_vmem_limit_bytes():
    """~75% of physical VMEM, capped at 110 MiB (≈48 MiB v7x, ≈96 MiB v5e/v6e)."""
    cap = 64 * 1024 * 1024
    try:
        cap = int(pltpu.get_tpu_info().vmem_capacity_bytes)
    except Exception:
        pass
    return int(min(cap * 3 // 4, 110 * 1024 * 1024))


# ----------------------------- fused Pallas kernel --------------------------

def _fused_backbone_kernel(
    patches_ref,              # (1, S, Kp)       bf16  stem im2col patches
    stem_w_ref,               # (Kp, C_stem)     bf16  (BN scale folded in)
    stem_b_ref,               # (1, C_stem)      f32
    dw_w_ref,                 # (9, 1, C_stem)   f32   (BN scale folded in)
    dw_b_ref,                 # (1, C_stem)      f32
    mask_ref,                 # (S, 9)           f32   precomputed border masks
    wf_ref,                   # (C_stem, C_feat) bf16  pw+head fused weights
    bf_ref,                   # (1, C_feat)      f32   pw+head fused bias
    out_ref,                  # (1, 1, C_feat)   f32   pooled features
    z_ref,                    # (S_pad, C_stem)  bf16  VMEM scratch
    *, Ho, Wo, head_ts, n_chunks):
    S = Ho * Wo
    c_stem = stem_w_ref.shape[-1]
    c_feat = out_ref.shape[-1]
    s_pad = z_ref.shape[0]

    # ---- Stage 1: stem conv as matmul on 3x3/stride-2 patches (+BN, +SiLU).
    # bf16 MXU inputs, f32 accumulate / epilogue.  BN scale is pre-folded
    # into stem_w, so only the bias add remains.
    y = jnp.dot(patches_ref[0], stem_w_ref[...],
                preferred_element_type=jnp.float32)            # (S, C_stem)
    y = y + stem_b_ref[...]
    y = y * jax.nn.sigmoid(y)                                   # SiLU (EUP)

    # ---- Stage 2: 3x3 depthwise conv (stride 1, zero pad) + BN + SiLU in the
    # flat (S, C) layout: each tap is a sublane roll (XLU) of the activation
    # times a PRECOMPUTED border mask column (no in-kernel iota/compare/select).
    acc = jnp.zeros((S, c_stem), jnp.float32)
    for ki in range(3):
        for kj in range(3):
            k = ki * 3 + kj
            di, dj = ki - 1, kj - 1
            shift = (-(di * Wo + dj)) % S
            tap = y if shift == 0 else pltpu.roll(y, shift=shift, axis=0)
            if di != 0 or dj != 0:
                tap = tap * mask_ref[:, k:k + 1]                # (S,1) bcast
            acc = acc + tap * dw_w_ref[k]                       # (1,C) bcast
    z = acc + dw_b_ref[...]
    z = z * jax.nn.sigmoid(z)

    # Stash the pre-head activation in VMEM scratch (bf16) so the head/GAP
    # loop uses bounded control flow; zero any padded rows so the padded head
    # matmul stays finite (their GAP weight is 0 below).
    z_ref[0:S, :] = z.astype(jnp.bfloat16)
    if s_pad > S:
        z_ref[S:s_pad, :] = jnp.zeros((s_pad - S, c_stem), jnp.bfloat16)

    # ---- Stage 3+4 (fused): 1x1 project + head 1x1 + BN + SiLU + GAP.
    # The pointwise stage is algebraically folded into wf/bf, so each chunk is
    # a single z_bf16 @ W_fused.  GAP is a ones-row matmul on the MXU (keeps
    # the cross-sublane reduce off the XLU, which carries the rolls).
    wf = wf_ref[...]
    bf = bf_ref[...]
    inv_s = 1.0 / float(S)
    gw_const = jnp.full((1, head_ts), inv_s, jnp.float32) if s_pad == S else None

    def body(c, gap):
        lo = pl.multiple_of(c * head_ts, 16)
        zc = z_ref[pl.ds(lo, head_ts), :]                       # bf16 chunk
        h = jnp.dot(zc, wf, preferred_element_type=jnp.float32)
        h = h + bf
        # TODO(synk): on v6e/v7x run this epilogue in bf16 (f32 kept: v5e-safe).
        h = h * jax.nn.sigmoid(h)
        if gw_const is not None:
            gw = gw_const
        else:
            idx = lo + jax.lax.broadcasted_iota(jnp.int32, (1, head_ts), 1)
            gw = jnp.where(idx < S, inv_s, 0.0)
        return gap + jnp.dot(gw, h, preferred_element_type=jnp.float32)

    gap = jax.lax.fori_loop(0, n_chunks, body,
                            jnp.zeros((1, c_feat), jnp.float32))
    out_ref[...] = gap.reshape(1, 1, c_feat)


def fused_backbone(patches, masks, params, Ho, Wo, *, head_ts=1024):
    """One fused pallas_call per batch image: stem -> dw -> fused head + GAP."""
    B, S, kp = patches.shape
    c_stem = params['stem_w'].shape[1]
    c_feat = params['w_fused'].shape[1]

    head_ts = max(16, min(head_ts, _round_up(S, 16)))
    head_ts = _round_up(head_ts, 16)
    n_chunks = pl.cdiv(S, head_ts)
    s_pad = n_chunks * head_ts

    def const_spec(shape):
        nd = len(shape)
        return pl.BlockSpec(shape, lambda b, _nd=nd: (0,) * _nd)

    kernel = functools.partial(_fused_backbone_kernel, Ho=Ho, Wo=Wo,
                               head_ts=head_ts, n_chunks=n_chunks)
    return pl.pallas_call(
        kernel,
        out_shape=jax.ShapeDtypeStruct((B, 1, c_feat), jnp.float32),
        grid=(B,),
        in_specs=[
            pl.BlockSpec((1, S, kp), lambda b: (b, 0, 0)),   # per-image patches
            const_spec(params['stem_w'].shape),
            const_spec(params['stem_bias'].shape),
            const_spec(params['dw_w'].shape),
            const_spec(params['dw_bias'].shape),
            const_spec(masks.shape),
            const_spec(params['w_fused'].shape),
            const_spec(params['b_fused'].shape),
        ],
        out_specs=pl.BlockSpec((1, 1, c_feat), lambda b: (b, 0, 0)),
        scratch_shapes=[pltpu.VMEM((s_pad, c_stem), jnp.bfloat16)],
        compiler_params=pltpu.CompilerParams(
            # Batch axis shards across TensorCores on multi-TC parts (v7x);
            # harmless on single-TC v5e/v6e.
            dimension_semantics=("parallel",),
            vmem_limit_bytes=_pick_vmem_limit_bytes(),
        ),
    )(patches, params['stem_w'], params['stem_bias'],
      params['dw_w'], params['dw_bias'], masks,
      params['w_fused'], params['b_fused'])


# ----------------------------- JAX glue -------------------------------------

def _im2col_stride2(x_nhwc, k_pad):
    """3x3 / stride-2 / pad-1 patch extraction for the stem, with the
    contraction dim zero-padded to `k_pad` (27 -> 32 for clean bf16 packing)."""
    B, H, W, C = x_nhwc.shape
    xp = jnp.pad(x_nhwc, ((0, 0), (1, 1), (1, 1), (0, 0)))
    Ho = (H + 2 - 3) // 2 + 1
    Wo = (W + 2 - 3) // 2 + 1
    cols = [xp[:, ki:ki + 2 * Ho:2, kj:kj + 2 * Wo:2, :]
            for ki in range(3) for kj in range(3)]
    patches = jnp.concatenate(cols, axis=-1).reshape(B, Ho * Wo, 9 * C)
    if k_pad > 9 * C:
        patches = jnp.pad(patches, ((0, 0), (0, 0), (0, k_pad - 9 * C)))
    return patches, Ho, Wo


def _dw_border_masks(Ho, Wo):
    """Precomputed 3x3 zero-padding border masks, shape (S, 9) float32."""
    hh = jnp.repeat(jnp.arange(Ho), Wo)
    ww = jnp.tile(jnp.arange(Wo), Ho)
    cols = []
    for ki in range(3):
        for kj in range(3):
            di, dj = ki - 1, kj - 1
            m = ((hh + di >= 0) & (hh + di < Ho) &
                 (ww + dj >= 0) & (ww + dj < Wo))
            cols.append(m.astype(jnp.float32))
    return jnp.stack(cols, axis=-1)            # (S, 9)


def init_params(key, c_in=3, c_stem=32, c_mid=64, c_feat=1280):
    """Deterministic synthetic parameters with BatchNorm + the linear pointwise
    stage algebraically folded (all folding in f32, single bf16 cast)."""
    ks = jax.random.split(key, 12)

    def bn(kg, kb, c):
        gamma = 0.5 + jax.random.uniform(kg, (c,), jnp.float32)   # > 0
        beta = 0.01 * jax.random.normal(kb, (c,), jnp.float32)
        scale = (gamma / jnp.sqrt(1.0 + 1e-3)).reshape(1, c)      # mean0/var1 fold
        bias = beta.reshape(1, c)
        return scale, bias

    kp_raw = 9 * c_in
    kp = max(32, _round_up(kp_raw, 8))
    stem_w = 0.1 * jax.random.normal(ks[0], (kp_raw, c_stem), jnp.float32)
    stem_w = jnp.pad(stem_w, ((0, kp - kp_raw), (0, 0)))
    stem_s, stem_b = bn(ks[1], ks[2], c_stem)
    dw_w = 0.1 * jax.random.normal(ks[3], (9, 1, c_stem), jnp.float32)
    dw_s, dw_b = bn(ks[4], ks[5], c_stem)
    pw_w = 0.1 * jax.random.normal(ks[6], (c_stem, c_mid), jnp.float32)
    pw_s, pw_b = bn(ks[7], ks[8], c_mid)
    head_w = 0.05 * jax.random.normal(ks[9], (c_mid, c_feat), jnp.float32)
    head_s, head_b = bn(ks[10], ks[11], c_feat)

    # ---- algebraic folding (all f32) ----
    stem_w_f = stem_w * stem_s                         # BN scale -> stem weights
    dw_w_f = dw_w * dw_s                               # BN scale -> dw taps
    a = pw_w * pw_s                                    # BN scale -> pw weights
    w_fused = (a @ head_w) * head_s                    # (C_stem, C_feat)
    b_fused = (pw_b @ head_w) * head_s + head_b        # (1, C_feat)

    return {
        'stem_w': stem_w_f.astype(jnp.bfloat16),
        'stem_bias': stem_b,
        'dw_w': dw_w_f,
        'dw_bias': dw_b,
        'w_fused': w_fused.astype(jnp.bfloat16),
        'b_fused': b_fused,
    }


@jax.jit
def efficient_lightgbm_forward(x_nchw, params):
    """Forward pass: feature extraction + flatten -> (batch, 1280) float32."""
    x = jnp.transpose(x_nchw, (0, 2, 3, 1)).astype(jnp.float32)  # NCHW -> NHWC
    kp = params['stem_w'].shape[0]
    patches, Ho, Wo = _im2col_stride2(x, kp)
    patches = patches.astype(jnp.bfloat16)     # halve HBM traffic into kernel
    masks = _dw_border_masks(Ho, Wo)
    feats = fused_backbone(patches, masks, params, Ho, Wo)       # (B, 1, 1280)
    return feats.reshape(feats.shape[0], -1)                     # (B, 1280)


if __name__ == "__main__":
    key = jax.random.PRNGKey(0)
    k_x, k_p = jax.random.split(key)
    x = jax.random.normal(k_x, (2, 3, 16, 16), jnp.float32)  # NCHW like PyTorch
    params = init_params(k_p)

    feats = efficient_lightgbm_forward(x, params)
    feats = jax.block_until_ready(feats)

    assert feats.shape == (2, 1280), feats.shape
    assert feats.dtype == jnp.float32
    assert bool(jnp.all(jnp.isfinite(feats)))
    print("KERNEL_OK")
</pallas_src>

<mosaic_0001>
module attributes {stable_mosaic.version = 11 : i64} {
  func.func @_fused_backbone_kernel(%arg0: i32, %arg1: memref<1x64x32xbf16, #tpu.memory_space<vmem>>, %arg2: memref<32x32xbf16, #tpu.memory_space<vmem>>, %arg3: memref<1x32xf32, #tpu.memory_space<vmem>>, %arg4: memref<9x1x32xf32, #tpu.memory_space<vmem>>, %arg5: memref<1x32xf32, #tpu.memory_space<vmem>>, %arg6: memref<64x9xf32, #tpu.memory_space<vmem>>, %arg7: memref<32x1280xbf16, #tpu.memory_space<vmem>>, %arg8: memref<1x1280xf32, #tpu.memory_space<vmem>>, %arg9: memref<1x1x1280xf32, #tpu.memory_space<vmem>>, %arg10: memref<64x32xbf16, #tpu.memory_space<vmem>>) attributes {dimension_semantics = [#tpu.dimension_semantics<parallel>], iteration_bounds = array<i64: 2>, scalar_prefetch = 0 : i64, scratch_operands = 1 : i64, tpu.core_type = #tpu.core_type<tc>, window_params = [{transform_indices = @transform_0, window_bounds = array<i64: 1, 64, 32>}, {pipeline_mode = #tpu.pipeline_mode<synchronous>, transform_indices = @transform_1, window_bounds = array<i64: 32, 32>}, {pipeline_mode = #tpu.pipeline_mode<synchronous>, transform_indices = @transform_2, window_bounds = array<i64: 1, 32>}, {pipeline_mode = #tpu.pipeline_mode<synchronous>, transform_indices = @transform_3, window_bounds = array<i64: 9, 1, 32>}, {pipeline_mode = #tpu.pipeline_mode<synchronous>, transform_indices = @transform_4, window_bounds = array<i64: 1, 32>}, {pipeline_mode = #tpu.pipeline_mode<synchronous>, transform_indices = @transform_5, window_bounds = array<i64: 64, 9>}, {pipeline_mode = #tpu.pipeline_mode<synchronous>, transform_indices = @transform_6, window_bounds = array<i64: 32, 1280>}, {pipeline_mode = #tpu.pipeline_mode<synchronous>, transform_indices = @transform_7, window_bounds = array<i64: 1, 1280>}, {transform_indices = @transform_8, window_bounds = array<i64: 1, 1, 1280>}]} {
    %c0 = arith.constant 0 : index
    %c0_0 = arith.constant 0 : index
    %c0_1 = arith.constant 0 : index
    %0 = vector.load %arg1[%c0, %c0_0, %c0_1] : memref<1x64x32xbf16, #tpu.memory_space<vmem>>, vector<1x64x32xbf16>
    %1 = vector.shape_cast %0 : vector<1x64x32xbf16> to vector<64x32xbf16>
    %c0_2 = arith.constant 0 : index
    %c0_3 = arith.constant 0 : index
    %2 = vector.load %arg2[%c0_2, %c0_3] : memref<32x32xbf16, #tpu.memory_space<vmem>>, vector<32x32xbf16>
    %cst = arith.constant dense<0.000000e+00> : vector<64x32xf32>
    %3 = tpu.matmul %1, %2, %cst {dimension_numbers = #tpu.dot_dimension_numbers<[1], [0], [0], [1], [0, 0, 1, 1], [], []>} : vector<64x32xbf16>, vector<32x32xbf16>, vector<64x32xf32> -> vector<64x32xf32>
    %c0_4 = arith.constant 0 : index
    %c0_5 = arith.constant 0 : index
    %4 = vector.load %arg3[%c0_4, %c0_5] : memref<1x32xf32, #tpu.memory_space<vmem>>, vector<1x32xf32>
    %5 = vector.broadcast %4 : vector<1x32xf32> to vector<64x32xf32>
    %6 = arith.addf %3, %5 : vector<64x32xf32>
    %7 = arith.negf %6 : vector<64x32xf32>
    %8 = math.exp %7 : vector<64x32xf32>
    %cst_6 = arith.constant 1.000000e+00 : f32
    %9 = vector.broadcast %cst_6 : f32 to vector<64x32xf32>
    %10 = arith.addf %9, %8 : vector<64x32xf32>
    %11 = arith.divf %9, %10 : vector<64x32xf32>
    %12 = arith.mulf %6, %11 : vector<64x32xf32>
    %cst_7 = arith.constant 0.000000e+00 : f32
    %13 = vector.broadcast %cst_7 : f32 to vector<64x32xf32>
    %c9_i32 = arith.constant 9 : i32
    %14 = tpu.dynamic_rotate %12 by %c9_i32 dim 0 : vector<64x32xf32>, i32 -> vector<64x32xf32>
    %c0_8 = arith.constant 0 : index
    %c0_9 = arith.constant 0 : index
    %15 = vector.load %arg6[%c0_8, %c0_9] : memref<64x9xf32, #tpu.memory_space<vmem>>, vector<64x1xf32>
    %16 = vector.broadcast %15 : vector<64x1xf32> to vector<64x32xf32>
    %17 = arith.mulf %14, %16 : vector<64x32xf32>
    %c0_10 = arith.constant 0 : index
    %c0_11 = arith.constant 0 : index
    %c0_12 = arith.constant 0 : index
    %18 = vector.load %arg4[%c0_10, %c0_11, %c0_12] : memref<9x1x32xf32, #tpu.memory_space<vmem>>, vector<1x1x32xf32>
    %19 = vector.shape_cast %18 : vector<1x1x32xf32> to vector<1x32xf32>
    %20 = vector.broadcast %19 : vector<1x32xf32> to vector<64x32xf32>
    %21 = arith.mulf %17, %20 : vector<64x32xf32>
    %22 = arith.addf %13, %21 : vector<64x32xf32>
    %c8_i32 = arith.constant 8 : i32
    %23 = tpu.dynamic_rotate %12 by %c8_i32 dim 0 : vector<64x32xf32>, i32 -> vector<64x32xf32>
    %c0_13 = arith.constant 0 : index
    %c1 = arith.constant 1 : index
    %24 = vector.load %arg6[%c0_13, %c1] : memref<64x9xf32, #tpu.memory_space<vmem>>, vector<64x1xf32>
    %25 = vector.broadcast %24 : vector<64x1xf32> to vector<64x32xf32>
    %26 = arith.mulf %23, %25 : vector<64x32xf32>
    %c1_14 = arith.constant 1 : index
    %c0_15 = arith.constant 0 : index
    %c0_16 = arith.constant 0 : index
    %27 = vector.load %arg4[%c1_14, %c0_15, %c0_16] : memref<9x1x32xf32, #tpu.memory_space<vmem>>, vector<1x1x32xf32>
    %28 = vector.shape_cast %27 : vector<1x1x32xf32> to vector<1x32xf32>
    %29 = vector.broadcast %28 : vector<1x32xf32> to vector<64x32xf32>
    %30 = arith.mulf %26, %29 : vector<64x32xf32>
    %31 = arith.addf %22, %30 : vector<64x32xf32>
    %c7_i32 = arith.constant 7 : i32
    %32 = tpu.dynamic_rotate %12 by %c7_i32 dim 0 : vector<64x32xf32>, i32 -> vector<64x32xf32>
    %c0_17 = arith.constant 0 : index
    %c2 = arith.constant 2 : index
    %33 = vector.load %arg6[%c0_17, %c2] : memref<64x9xf32, #tpu.memory_space<vmem>>, vector<64x1xf32>
    %34 = vector.broadcast %33 : vector<64x1xf32> to vector<64x32xf32>
    %35 = arith.mulf %32, %34 : vector<64x32xf32>
    %c2_18 = arith.constant 2 : index
    %c0_19 = arith.constant 0 : index
    %c0_20 = arith.constant 0 : index
    %36 = vector.load %arg4[%c2_18, %c0_19, %c0_20] : memref<9x1x32xf32, #tpu.memory_space<vmem>>, vector<1x1x32xf32>
    %37 = vector.shape_cast %36 : vector<1x1x32xf32> to vector<1x32xf32>
    %38 = vector.broadcast %37 : vector<1x32xf32> to vector<64x32xf32>
    %39 = arith.mulf %35, %38 : vector<64x32xf32>
    %40 = arith.addf %31, %39 : vector<64x32xf32>
    %c1_i32 = arith.constant 1 : i32
    %41 = tpu.dynamic_rotate %12 by %c1_i32 dim 0 : vector<64x32xf32>, i32 -> vector<64x32xf32>
    %c0_21 = arith.constant 0 : index
    %c3 = arith.constant 3 : index
    %42 = vector.load %arg6[%c0_21, %c3] : memref<64x9xf32, #tpu.memory_space<vmem>>, vector<64x1xf32>
    %43 = vector.broadcast %42 : vector<64x1xf32> to vector<64x32xf32>
    %44 = arith.mulf %41, %43 : vector<64x32xf32>
    %c3_22 = arith.constant 3 : index
    %c0_23 = arith.constant 0 : index
    %c0_24 = arith.constant 0 : index
    %45 = vector.load %arg4[%c3_22, %c0_23, %c0_24] : memref<9x1x32xf32, #tpu.memory_space<vmem>>, vector<1x1x32xf32>
    %46 = vector.shape_cast %45 : vector<1x1x32xf32> to vector<1x32xf32>
    %47 = vector.broadcast %46 : vector<1x32xf32> to vector<64x32xf32>
    %48 = arith.mulf %44, %47 : vector<64x32xf32>
    %49 = arith.addf %40, %48 : vector<64x32xf32>
    %c4 = arith.constant 4 : index
    %c0_25 = arith.constant 0 : index
    %c0_26 = arith.constant 0 : index
    %50 = vector.load %arg4[%c4, %c0_25, %c0_26] : memref<9x1x32xf32, #tpu.memory_space<vmem>>, vector<1x1x32xf32>
    %51 = vector.shape_cast %50 : vector<1x1x32xf32> to vector<1x32xf32>
    %52 = vector.broadcast %51 : vector<1x32xf32> to vector<64x32xf32>
    %53 = arith.mulf %12, %52 : vector<64x32xf32>
    %54 = arith.addf %49, %53 : vector<64x32xf32>
    %c63_i32 = arith.constant 63 : i32
    %55 = tpu.dynamic_rotate %12 by %c63_i32 dim 0 : vector<64x32xf32>, i32 -> vector<64x32xf32>
    %c0_27 = arith.constant 0 : index
    %c5 = arith.constant 5 : index
    %56 = vector.load %arg6[%c0_27, %c5] : memref<64x9xf32, #tpu.memory_space<vmem>>, vector<64x1xf32>
    %57 = vector.broadcast %56 : vector<64x1xf32> to vector<64x32xf32>
    %58 = arith.mulf %55, %57 : vector<64x32xf32>
    %c5_28 = arith.constant 5 : index
    %c0_29 = arith.constant 0 : index
    %c0_30 = arith.constant 0 : index
    %59 = vector.load %arg4[%c5_28, %c0_29, %c0_30] : memref<9x1x32xf32, #tpu.memory_space<vmem>>, vector<1x1x32xf32>
    %60 = vector.shape_cast %59 : vector<1x1x32xf32> to vector<1x32xf32>
    %61 = vector.broadcast %60 : vector<1x32xf32> to vector<64x32xf32>
    %62 = arith.mulf %58, %61 : vector<64x32xf32>
    %63 = arith.addf %54, %62 : vector<64x32xf32>
    %c57_i32 = arith.constant 57 : i32
    %64 = tpu.dynamic_rotate %12 by %c57_i32 dim 0 : vector<64x32xf32>, i32 -> vector<64x32xf32>
    %c0_31 = arith.constant 0 : index
    %c6 = arith.constant 6 : index
    %65 = vector.load %arg6[%c0_31, %c6] : memref<64x9xf32, #tpu.memory_space<vmem>>, vector<64x1xf32>
    %66 = vector.broadcast %65 : vector<64x1xf32> to vector<64x32xf32>
    %67 = arith.mulf %64, %66 : vector<64x32xf32>
    %c6_32 = arith.constant 6 : index
    %c0_33 = arith.constant 0 : index
    %c0_34 = arith.constant 0 : index
    %68 = vector.load %arg4[%c6_32, %c0_33, %c0_34] : memref<9x1x32xf32, #tpu.memory_space<vmem>>, vector<1x1x32xf32>
    %69 = vector.shape_cast %68 : vector<1x1x32xf32> to vector<1x32xf32>
    %70 = vector.broadcast %69 : vector<1x32xf32> to vector<64x32xf32>
    %71 = arith.mulf %67, %70 : vector<64x32xf32>
    %72 = arith.addf %63, %71 : vector<64x32xf32>
    %c56_i32 = arith.constant 56 : i32
    %73 = tpu.dynamic_rotate %12 by %c56_i32 dim 0 : vector<64x32xf32>, i32 -> vector<64x32xf32>
    %c0_35 = arith.constant 0 : index
    %c7 = arith.constant 7 : index
    %74 = vector.load %arg6[%c0_35, %c7] : memref<64x9xf32, #tpu.memory_space<vmem>>, vector<64x1xf32>
    %75 = vector.broadcast %74 : vector<64x1xf32> to vector<64x32xf32>
    %76 = arith.mulf %73, %75 : vector<64x32xf32>
    %c7_36 = arith.constant 7 : index
    %c0_37 = arith.constant 0 : index
    %c0_38 = arith.constant 0 : index
    %77 = vector.load %arg4[%c7_36, %c0_37, %c0_38] : memref<9x1x32xf32, #tpu.memory_space<vmem>>, vector<1x1x32xf32>
    %78 = vector.shape_cast %77 : vector<1x1x32xf32> to vector<1x32xf32>
    %79 = vector.broadcast %78 : vector<1x32xf32> to vector<64x32xf32>
    %80 = arith.mulf %76, %79 : vector<64x32xf32>
    %81 = arith.addf %72, %80 : vector<64x32xf32>
    %c55_i32 = arith.constant 55 : i32
    %82 = tpu.dynamic_rotate %12 by %c55_i32 dim 0 : vector<64x32xf32>, i32 -> vector<64x32xf32>
    %c0_39 = arith.constant 0 : index
    %c8 = arith.constant 8 : index
    %83 = vector.load %arg6[%c0_39, %c8] : memref<64x9xf32, #tpu.memory_space<vmem>>, vector<64x1xf32>
    %84 = vector.broadcast %83 : vector<64x1xf32> to vector<64x32xf32>
    %85 = arith.mulf %82, %84 : vector<64x32xf32>
    %c8_40 = arith.constant 8 : index
    %c0_41 = arith.constant 0 : index
    %c0_42 = arith.constant 0 : index
    %86 = vector.load %arg4[%c8_40, %c0_41, %c0_42] : memref<9x1x32xf32, #tpu.memory_space<vmem>>, vector<1x1x32xf32>
    %87 = vector.shape_cast %86 : vector<1x1x32xf32> to vector<1x32xf32>
    %88 = vector.broadcast %87 : vector<1x32xf32> to vector<64x32xf32>
    %89 = arith.mulf %85, %88 : vector<64x32xf32>
    %90 = arith.addf %81, %89 : vector<64x32xf32>
    %c0_43 = arith.constant 0 : index
    %c0_44 = arith.constant 0 : index
    %91 = vector.load %arg5[%c0_43, %c0_44] : memref<1x32xf32, #tpu.memory_space<vmem>>, vector<1x32xf32>
    %92 = vector.broadcast %91 : vector<1x32xf32> to vector<64x32xf32>
    %93 = arith.addf %90, %92 : vector<64x32xf32>
    %94 = arith.negf %93 : vector<64x32xf32>
    %95 = math.exp %94 : vector<64x32xf32>
    %cst_45 = arith.constant 1.000000e+00 : f32
    %96 = vector.broadcast %cst_45 : f32 to vector<64x32xf32>
    %97 = arith.addf %96, %95 : vector<64x32xf32>
    %98 = arith.divf %96, %97 : vector<64x32xf32>
    %99 = arith.mulf %93, %98 : vector<64x32xf32>
    %100 = arith.truncf %99 : vector<64x32xf32> to vector<64x32xbf16>
    %c0_46 = arith.constant 0 : index
    %c0_47 = arith.constant 0 : index
    %101 = vector.load %arg10[%c0_46, %c0_47] : memref<64x32xbf16, #tpu.memory_space<vmem>>, vector<64x32xbf16>
    tpu.vector_store %arg10[%c0_46, %c0_47], %100 {strides = array<i32>} : memref<64x32xbf16, #tpu.memory_space<vmem>>, vector<64x32xbf16>,
    %c0_48 = arith.constant 0 : index
    %c0_49 = arith.constant 0 : index
    %102 = vector.load %arg7[%c0_48, %c0_49] : memref<32x1280xbf16, #tpu.memory_space<vmem>>, vector<32x1280xbf16>
    %c0_50 = arith.constant 0 : index
    %c0_51 = arith.constant 0 : index
    %103 = vector.load %arg8[%c0_50, %c0_51] : memref<1x1280xf32, #tpu.memory_space<vmem>>, vector<1x1280xf32>
    %cst_52 = arith.constant 1.562500e-02 : f32
    %104 = vector.broadcast %cst_52 : f32 to vector<1x64xf32>
    %cst_53 = arith.constant 0.000000e+00 : f32
    %105 = vector.broadcast %cst_53 : f32 to vector<1x1280xf32>
    %c0_i32 = arith.constant 0 : i32
    %c64_i32 = arith.constant 64 : i32
    %106 = arith.muli %c0_i32, %c64_i32 : i32
    %107 = tpu.assume_multiple %106, 16 : i32
    %108 = arith.index_cast %107 : i32 to index
    %c0_54 = arith.constant 0 : index
    %109 = vector.load %arg10[%108, %c0_54] : memref<64x32xbf16, #tpu.memory_space<vmem>>, vector<64x32xbf16>
    %cst_55 = arith.constant dense<0.000000e+00> : vector<64x1280xf32>
    %110 = tpu.matmul %109, %102, %cst_55 {dimension_numbers = #tpu.dot_dimension_numbers<[1], [0], [0], [1], [0, 0, 1, 1], [], []>} : vector<64x32xbf16>, vector<32x1280xbf16>, vector<64x1280xf32> -> vector<64x1280xf32>
    %111 = vector.broadcast %103 : vector<1x1280xf32> to vector<64x1280xf32>
    %112 = arith.addf %110, %111 : vector<64x1280xf32>
    %113 = arith.negf %112 : vector<64x1280xf32>
    %114 = math.exp %113 : vector<64x1280xf32>
    %cst_56 = arith.constant 1.000000e+00 : f32
    %115 = vector.broadcast %cst_56 : f32 to vector<64x1280xf32>
    %116 = arith.addf %115, %114 : vector<64x1280xf32>
    %117 = arith.divf %115, %116 : vector<64x1280xf32>
    %118 = arith.mulf %112, %117 : vector<64x1280xf32>
    %cst_57 = arith.constant dense<0.000000e+00> : vector<1x1280xf32>
    %119 = tpu.matmul %104, %118, %cst_57 {dimension_numbers = #tpu.dot_dimension_numbers<[1], [0], [0], [1], [0, 0, 1, 1], [], []>} : vector<1x64xf32>, vector<64x1280xf32>, vector<1x1280xf32> -> vector<1x1280xf32>
    %120 = arith.addf %105, %119 : vector<1x1280xf32>
    %c1_i32_58 = arith.constant 1 : i32
    %121 = vector.shape_cast %120 : vector<1x1280xf32> to vector<1x1x1280xf32>
    %c0_59 = arith.constant 0 : index
    %c0_60 = arith.constant 0 : index
    %c0_61 = arith.constant 0 : index
    %122 = vector.load %arg9[%c0_59, %c0_60, %c0_61] : memref<1x1x1280xf32, #tpu.memory_space<vmem>>, vector<1x1x1280xf32>
    tpu.vector_store %arg9[%c0_59, %c0_60, %c0_61], %121 {strides = array<i32>} : memref<1x1x1280xf32, #tpu.memory_space<vmem>>, vector<1x1x1280xf32>,
    return
  }
  func.func @transform_0(%arg0: i32) -> (i32, i32, i32) {
    %c0_i32 = arith.constant 0 : i32
    %c0_i32_0 = arith.constant 0 : i32
    %c0_i32_1 = arith.constant 0 : i32
    return %arg0, %c0_i32, %c0_i32_0 : i32, i32, i32
  }
  func.func @transform_1(%arg0: i32) -> (i32, i32) {
    %c0_i32 = arith.constant 0 : i32
    %c0_i32_0 = arith.constant 0 : i32
    %c0_i32_1 = arith.constant 0 : i32
    return %c0_i32, %c0_i32_0 : i32, i32
  }
  func.func @transform_2(%arg0: i32) -> (i32, i32) {
    %c0_i32 = arith.constant 0 : i32
    %c0_i32_0 = arith.constant 0 : i32
    %c0_i32_1 = arith.constant 0 : i32
    return %c0_i32, %c0_i32_0 : i32, i32
  }
  func.func @transform_3(%arg0: i32) -> (i32, i32, i32) {
    %c0_i32 = arith.constant 0 : i32
    %c0_i32_0 = arith.constant 0 : i32
    %c0_i32_1 = arith.constant 0 : i32
    %c0_i32_2 = arith.constant 0 : i32
    return %c0_i32, %c0_i32_0, %c0_i32_1 : i32, i32, i32
  }
  func.func @transform_4(%arg0: i32) -> (i32, i32) {
    %c0_i32 = arith.constant 0 : i32
    %c0_i32_0 = arith.constant 0 : i32
    %c0_i32_1 = arith.constant 0 : i32
    return %c0_i32, %c0_i32_0 : i32, i32
  }
  func.func @transform_5(%arg0: i32) -> (i32, i32) {
    %c0_i32 = arith.constant 0 : i32
    %c0_i32_0 = arith.constant 0 : i32
    %c0_i32_1 = arith.constant 0 : i32
    return %c0_i32, %c0_i32_0 : i32, i32
  }
  func.func @transform_6(%arg0: i32) -> (i32, i32) {
    %c0_i32 = arith.constant 0 : i32
    %c0_i32_0 = arith.constant 0 : i32
    %c0_i32_1 = arith.constant 0 : i32
    return %c0_i32, %c0_i32_0 : i32, i32
  }
  func.func @transform_7(%arg0: i32) -> (i32, i32) {
    %c0_i32 = arith.constant 0 : i32
    %c0_i32_0 = arith.constant 0 : i32
    %c0_i32_1 = arith.constant 0 : i32
    return %c0_i32, %c0_i32_0 : i32, i32
  }
  func.func @transform_8(%arg0: i32) -> (i32, i32, i32) {
    %c0_i32 = arith.constant 0 : i32
    %c0_i32_0 = arith.constant 0 : i32
    %c0_i32_1 = arith.constant 0 : i32
    return %arg0, %c0_i32, %c0_i32_0 : i32, i32, i32
  }
}

</mosaic_0001>

<llo_original>
// kernel: efficient_lightgbm_forward.1
$region0: #{efficient_lightgbm_forward.1}
  #allocation0 [shape = 'u32[]', space=smem, size = 0x4, offset = 0x4, fixed_abs, tag = 'smem constant byte address 0x4 - core index']
  #allocation1 [shape = 'u32[144,128]{1,0:T(1,128)}', space=vmem, size = 0x12000, scoped, tag = 'internal scratch']
  #allocation2 [shape = 'bf16[64,32]{1,0:T(16,128)(2,1)}', space=vmem, size = 0x4000, scoped, tag = 'scratch operand']
  %s0 = inlined_call_operand.vmem [shape: bf16[2,64,32], index: 0, kind: input, shape index: {}]
  %s1 = inlined_call_operand.vmem [shape: bf16[32,32], index: 1, kind: input, shape index: {}]
  %s2 = inlined_call_operand.vmem [shape: f32[1,32], index: 2, kind: input, shape index: {}]
  %s3 = inlined_call_operand.vmem [shape: f32[9,1,32], index: 3, kind: input, shape index: {}]
  %s4 = inlined_call_operand.vmem [shape: f32[1,32], index: 4, kind: input, shape index: {}]
  %s5 = inlined_call_operand.vmem [shape: f32[64,9], index: 5, kind: input, shape index: {}]
  %s6 = inlined_call_operand.vmem [shape: bf16[32,1280], index: 6, kind: input, shape index: {}]
  %s7 = inlined_call_operand.vmem [shape: f32[1,1280], index: 7, kind: input, shape index: {}]
  %s8 = inlined_call_operand.vmem [shape: f32[2,1,1280], index: 8, kind: output, shape index: {}]
  %s9 = sld [smem:[#allocation0]]
  $region65: #{efficient_lightgbm_forward.1} parent=0
    _
  %s11 = ssub.s32 1, %s9
  %s12 = scalar_select 0, %s11, %s9
  loop: start=0, step=1, limit=4
  $region2: #{efficient_lightgbm_forward.1} parent=0 // loop_pre_header
    _
  $region3: #{efficient_lightgbm_forward.1} parent=0 // loop_header
    %s14 = sphi 0, %s18
    %p15 = scmp.ge.s32.totalorder %s14, 4
    %s24 = sphi 0, %s26
    %s27 = sphi 0, %s24
    %s28 = sphi 0, %s27
    %s44 = sphi 0, %s28
    %s48 = sphi 0, %s48
    %s50 = sphi 0, %s48
    %s51 = sphi 0, %s50
    %s65 = sphi 0, %s51
    %s69 = sphi 0, %s69
    %s71 = sphi 0, %s69
    %s72 = sphi 0, %s71
    %s86 = sphi 0, %s72
    %s90 = sphi 0, %s90
    %s92 = sphi 0, %s90
    %s93 = sphi 0, %s92
    %s107 = sphi 0, %s93
    %s111 = sphi 0, %s111
    %s113 = sphi 0, %s111
    %s114 = sphi 0, %s113
    %s128 = sphi 0, %s114
    %s132 = sphi 0, %s132
    %s134 = sphi 0, %s132
    %s135 = sphi 0, %s134
    %s149 = sphi 0, %s135
    %s153 = sphi 0, %s153
    %s155 = sphi 0, %s153
    %s156 = sphi 0, %s155
    %s170 = sphi 0, %s156
    %s174 = sphi 0, %s174
    %s176 = sphi 0, %s174
    %s177 = sphi 0, %s176
    %s191 = sphi 0, %s177
    %s197 = sphi 0, %s199
    %s200 = sphi 0, %s197
    %s201 = sphi 0, %s200
    %s217 = sphi 0, %s201
  $region4: #{efficient_lightgbm_forward.1} parent=0 // loop_header_branch
    %17 = sbr.rel (%p15) target = $region8
  $region5: #{efficient_lightgbm_forward.1} parent=0 // loop_body
    %s19 = ssub.s32 %s14, 1
    %s20 = ssub.s32 %s14, 2
    %s21 = sadd.s32 %s14, 1
    %s22 = ssub.s32 %s14, %s21
    %p23 = scmp.eq.s32.totalorder %s22, 0
    %s25 = sadd.s32 %s24, 1
    %s26 = scalar_select %p23, %s24, %s25
    %p29 = pneg %p23
    %p30 = scmp.eq.s32.totalorder %s14, 1
    %p31 = por %p29, %p30
    %p32 = scmp.ne.s32.totalorder %s24, %s27
    %p33 = scmp.eq.s32.totalorder %s14, 0
    %p34 = por %p32, %p33
    %p35 = scmp.ne.s32.totalorder %s24, %s27
    %p36 = scmp.eq.s32.totalorder %s19, 1
    %p37 = por %p35, %p36
    %p38 = scmp.ne.s32.totalorder %s27, %s28
    %p39 = scmp.eq.s32.totalorder %s19, 0
    %p40 = por %p38, %p39
    %p41 = scmp.ne.s32.totalorder %s27, %s28
    %p42 = scmp.eq.s32.totalorder %s20, 1
    %p43 = por %p41, %p42
    %p45 = scmp.ne.s32.totalorder %s28, %s44
    %p46 = scmp.eq.s32.totalorder %s20, 0
    %p47 = por %p45, %p46
    %s49 = sadd.s32 %s48, 1
    %p52 = scmp.eq.s32.totalorder %s14, 1
    %p53 = scmp.ne.s32.totalorder %s48, %s50
    %p54 = scmp.eq.s32.totalorder %s14, 0
    %p55 = por %p53, %p54
    %p56 = scmp.ne.s32.totalorder %s48, %s50
    %p57 = scmp.eq.s32.totalorder %s19, 1
    %p58 = por %p56, %p57
    %p59 = scmp.ne.s32.totalorder %s50, %s51
    %p60 = scmp.eq.s32.totalorder %s19, 0
    %p61 = por %p59, %p60
    %p62 = scmp.ne.s32.totalorder %s50, %s51
    %p63 = scmp.eq.s32.totalorder %s20, 1
    %p64 = por %p62, %p63
    %p66 = scmp.ne.s32.totalorder %s51, %s65
    %p67 = scmp.eq.s32.totalorder %s20, 0
    %p68 = por %p66, %p67
    %s70 = sadd.s32 %s69, 1
    %p73 = scmp.eq.s32.totalorder %s14, 1
    %p74 = scmp.ne.s32.totalorder %s69, %s71
    %p75 = scmp.eq.s32.totalorder %s14, 0
    %p76 = por %p74, %p75
    %p77 = scmp.ne.s32.totalorder %s69, %s71
    %p78 = scmp.eq.s32.totalorder %s19, 1
    %p79 = por %p77, %p78
    %p80 = scmp.ne.s32.totalorder %s71, %s72
    %p81 = scmp.eq.s32.totalorder %s19, 0
    %p82 = por %p80, %p81
    %p83 = scmp.ne.s32.totalorder %s71, %s72
    %p84 = scmp.eq.s32.totalorder %s20, 1
    %p85 = por %p83, %p84
    %p87 = scmp.ne.s32.totalorder %s72, %s86
    %p88 = scmp.eq.s32.totalorder %s20, 0
    %p89 = por %p87, %p88
    %s91 = sadd.s32 %s90, 1
    %p94 = scmp.eq.s32.totalorder %s14, 1
    %p95 = scmp.ne.s32.totalorder %s90, %s92
    %p96 = scmp.eq.s32.totalorder %s14, 0
    %p97 = por %p95, %p96
    %p98 = scmp.ne.s32.totalorder %s90, %s92
    %p99 = scmp.eq.s32.totalorder %s19, 1
    %p100 = por %p98, %p99
    %p101 = scmp.ne.s32.totalorder %s92, %s93
    %p102 = scmp.eq.s32.totalorder %s19, 0
    %p103 = por %p101, %p102
    %p104 = scmp.ne.s32.totalorder %s92, %s93
    %p105 = scmp.eq.s32.totalorder %s20, 1
    %p106 = por %p104, %p105
    %p108 = scmp.ne.s32.totalorder %s93, %s107
    %p109 = scmp.eq.s32.totalorder %s20, 0
    %p110 = por %p108, %p109
    %s112 = sadd.s32 %s111, 1
    %p115 = scmp.eq.s32.totalorder %s14, 1
    %p116 = scmp.ne.s32.totalorder %s111, %s113
    %p117 = scmp.eq.s32.totalorder %s14, 0
    %p118 = por %p116, %p117
    %p119 = scmp.ne.s32.totalorder %s111, %s113
    %p120 = scmp.eq.s32.totalorder %s19, 1
    %p121 = por %p119, %p120
    %p122 = scmp.ne.s32.totalorder %s113, %s114
    %p123 = scmp.eq.s32.totalorder %s19, 0
    %p124 = por %p122, %p123
    %p125 = scmp.ne.s32.totalorder %s113, %s114
    %p126 = scmp.eq.s32.totalorder %s20, 1
    %p127 = por %p125, %p126
    %p129 = scmp.ne.s32.totalorder %s114, %s128
    %p130 = scmp.eq.s32.totalorder %s20, 0
    %p131 = por %p129, %p130
    %s133 = sadd.s32 %s132, 1
    %p136 = scmp.eq.s32.totalorder %s14, 1
    %p137 = scmp.ne.s32.totalorder %s132, %s134
    %p138 = scmp.eq.s32.totalorder %s14, 0
    %p139 = por %p137, %p138
    %p140 = scmp.ne.s32.totalorder %s132, %s134
    %p141 = scmp.eq.s32.totalorder %s19, 1
    %p142 = por %p140, %p141
    %p143 = scmp.ne.s32.totalorder %s134, %s135
    %p144 = scmp.eq.s32.totalorder %s19, 0
    %p145 = por %p143, %p144
    %p146 = scmp.ne.s32.totalorder %s134, %s135
    %p147 = scmp.eq.s32.totalorder %s20, 1
    %p148 = por %p146, %p147
    %p150 = scmp.ne.s32.totalorder %s135, %s149
    %p151 = scmp.eq.s32.totalorder %s20, 0
    %p152 = por %p150, %p151
    %s154 = sadd.s32 %s153, 1
    %p157 = scmp.eq.s32.totalorder %s14, 1
    %p158 = scmp.ne.s32.totalorder %s153, %s155
    %p159 = scmp.eq.s32.totalorder %s14, 0
    %p160 = por %p158, %p159
    %p161 = scmp.ne.s32.totalorder %s153, %s155
    %p162 = scmp.eq.s32.totalorder %s19, 1
    %p163 = por %p161, %p162
    %p164 = scmp.ne.s32.totalorder %s155, %s156
    %p165 = scmp.eq.s32.totalorder %s19, 0
    %p166 = por %p164, %p165
    %p167 = scmp.ne.s32.totalorder %s155, %s156
    %p168 = scmp.eq.s32.totalorder %s20, 1
    %p169 = por %p167, %p168
    %p171 = scmp.ne.s32.totalorder %s156, %s170
    %p172 = scmp.eq.s32.totalorder %s20, 0
    %p173 = por %p171, %p172
    %s175 = sadd.s32 %s174, 1
    %p178 = scmp.eq.s32.totalorder %s14, 1
    %p179 = scmp.ne.s32.totalorder %s174, %s176
    %p180 = scmp.eq.s32.totalorder %s14, 0
    %p181 = por %p179, %p180
    %p182 = scmp.ne.s32.totalorder %s174, %s176
    %p183 = scmp.eq.s32.totalorder %s19, 1
    %p184 = por %p182, %p183
    %p185 = scmp.ne.s32.totalorder %s176, %s177
    %p186 = scmp.eq.s32.totalorder %s19, 0
    %p187 = por %p185, %p186
    %p188 = scmp.ne.s32.totalorder %s176, %s177
    %p189 = scmp.eq.s32.totalorder %s20, 1
    %p190 = por %p188, %p189
    %p192 = scmp.ne.s32.totalorder %s177, %s191
    %p193 = scmp.eq.s32.totalorder %s20, 0
    %p194 = por %p192, %p193
    %s195 = ssub.s32 %s14, %s21
    %p196 = scmp.eq.s32.totalorder %s195, 0
    %s198 = sadd.s32 %s197, 1
    %s199 = scalar_select %p196, %s197, %s198
    %p202 = pneg %p196
    %p203 = scmp.eq.s32.totalorder %s14, 1
    %p204 = por %p202, %p203
    %p205 = scmp.ne.s32.totalorder %s197, %s200
    %p206 = scmp.eq.s32.totalorder %s14, 0
    %p207 = por %p205, %p206
    %p208 = scmp.ne.s32.totalorder %s197, %s200
    %p209 = scmp.eq.s32.totalorder %s19, 1
    %p210 = por %p208, %p209
    %p211 = scmp.ne.s32.totalorder %s200, %s201
    %p212 = scmp.eq.s32.totalorder %s19, 0
    %p213 = por %p211, %p212
    %p214 = scmp.ne.s32.totalorder %s200, %s201
    %p215 = scmp.eq.s32.totalorder %s20, 1
    %p216 = por %p214, %p215
    %p218 = scmp.ne.s32.totalorder %s201, %s217
    %p219 = scmp.eq.s32.totalorder %s20, 0
    %p220 = por %p218, %p219
    %p221 = scmp.le.s32.totalorder 1, %s14
    %p222 = scmp.lt.s32.totalorder %s14, 3
    %p223 = pnand %p221, %p222
    %p224 = pneg %p223
    // Predicated region
    $region9: #{efficient_lightgbm_forward.1} parent=5 // pred_check
      _
    $region10: #{efficient_lightgbm_forward.1} parent=5 // pred_check_branch
      %226 = sbr.rel (%p223) target = $region12
    $region11: #{efficient_lightgbm_forward.1} parent=5 // pred_region
      %s227 = ssub.s32 %s14, 1
      // Predicated region
      $region13: #{efficient_lightgbm_forward.1} parent=11 // pred_check
        %p228 = pneg %p61
      $region14: #{efficient_lightgbm_forward.1} parent=11 // pred_check_branch
        %230 = sbr.rel (%p228) target = $region16
      $region15: #{efficient_lightgbm_forward.1} parent=11 // pred_region
        _
      $region16: #{efficient_lightgbm_forward.1} parent=11 // pred_fallthru
        _
      // Predicated region
      $region17: #{efficient_lightgbm_forward.1} parent=11 // pred_check
        %p231 = pneg %p82
      $region18: #{efficient_lightgbm_forward.1} parent=11 // pred_check_branch
        %233 = sbr.rel (%p231) target = $region20
      $region19: #{efficient_lightgbm_forward.1} parent=11 // pred_region
        _
      $region20: #{efficient_lightgbm_forward.1} parent=11 // pred_fallthru
        _
      // Predicated region
      $region21: #{efficient_lightgbm_forward.1} parent=11 // pred_check
        %p234 = pneg %p103
      $region22: #{efficient_lightgbm_forward.1} parent=11 // pred_check_branch
        %236 = sbr.rel (%p234) target = $region24
      $region23: #{efficient_lightgbm_forward.1} parent=11 // pred_region
        _
      $region24: #{efficient_lightgbm_forward.1} parent=11 // pred_fallthru
        _
      // Predicated region
      $region25: #{efficient_lightgbm_forward.1} parent=11 // pred_check
        %p237 = pneg %p124
      $region26: #{efficient_lightgbm_forward.1} parent=11 // pred_check_branch
        %239 = sbr.rel (%p237) target = $region28
      $region27: #{efficient_lightgbm_forward.1} parent=11 // pred_region
        _
      $region28: #{efficient_lightgbm_forward.1} parent=11 // pred_fallthru
        _
      // Predicated region
      $region29: #{efficient_lightgbm_forward.1} parent=11 // pred_check
        %p240 = pneg %p145
      $region30: #{efficient_lightgbm_forward.1} parent=11 // pred_check_branch
        %242 = sbr.rel (%p240) target = $region32
      $region31: #{efficient_lightgbm_forward.1} parent=11 // pred_region
        _
      $region32: #{efficient_lightgbm_forward.1} parent=11 // pred_fallthru
        _
      // Predicated region
      $region33: #{efficient_lightgbm_forward.1} parent=11 // pred_check
        %p243 = pneg %p166
      $region34: #{efficient_lightgbm_forward.1} parent=11 // pred_check_branch
        %245 = sbr.rel (%p243) target = $region36
      $region35: #{efficient_lightgbm_forward.1} parent=11 // pred_region
        _
      $region36: #{efficient_lightgbm_forward.1} parent=11 // pred_fallthru
        _
      // Predicated region
      $region37: #{efficient_lightgbm_forward.1} parent=11 // pred_check
        %p246 = pneg %p187
      $region38: #{efficient_lightgbm_forward.1} parent=11 // pred_check_branch
        %248 = sbr.rel (%p246) target = $region40
      $region39: #{efficient_lightgbm_forward.1} parent=11 // pred_region
        _
      $region40: #{efficient_lightgbm_forward.1} parent=11 // pred_fallthru
        _
    $region12: #{efficient_lightgbm_forward.1} parent=5 // pred_fallthru
      _
    %p249 = scmp.lt.s32.totalorder %s14, 2
    // Predicated region
    $region41: #{efficient_lightgbm_forward.1} parent=5 // pred_check
      %p250 = pneg %p249
    $region42: #{efficient_lightgbm_forward.1} parent=5 // pred_check_branch
      %252 = sbr.rel (%p250) target = $region44
    $region43: #{efficient_lightgbm_forward.1} parent=5 // pred_region
      // Predicated region
      $region45: #{efficient_lightgbm_forward.1} parent=43 // pred_check
        %p253 = pneg %p34
      $region46: #{efficient_lightgbm_forward.1} parent=43 // pred_check_branch
        %255 = sbr.rel (%p253) target = $region48
      $region47: #{efficient_lightgbm_forward.1} parent=43 // pred_region
        %p256 = scmp.lt.s32.totalorder %s14, 1
        %s257 = scalar_select %p256, %s14, 1
        %s258 = smul.addr %s257, 8
        %s259 = smul.addr %s258, 4
        %s260 = scalar_lea.vmem %s0, %s259
      $region48: #{efficient_lightgbm_forward.1} parent=43 // pred_fallthru
        _
    $region44: #{efficient_lightgbm_forward.1} parent=5 // pred_fallthru
      _
    %p261 = scmp.le.s32.totalorder 1, %s14
    %p262 = scmp.lt.s32.totalorder %s14, 3
    %p263 = pnand %p261, %p262
    %p264 = pneg %p263
    // Predicated region
    $region49: #{efficient_lightgbm_forward.1} parent=5 // pred_check
      _
    $region50: #{efficient_lightgbm_forward.1} parent=5 // pred_check_branch
      %266 = sbr.rel (%p263) target = $region52
    $region51: #{efficient_lightgbm_forward.1} parent=5 // pred_region
      %s267 = ssub.s32 %s14, 1
      %p268 = scmp.lt.s32.totalorder %s19, 1
      %s269 = scalar_select %p268, %s19, 1
      %s270 = smul.addr %s269, 8
      %s271 = smul.addr %s270, 4
      %s272 = scalar_lea.vmem %s0, %s271
      %p273 = pneg %p40
      %p274 = pneg %p37
      %p275 = pneg %p61
      %p276 = pneg %p58
      %p277 = pneg %p82
      %p278 = pneg %p79
      %p279 = pneg %p103
      %p280 = pneg %p100
      %p281 = pneg %p124
      %p282 = pneg %p121
      %p283 = pneg %p145
      %p284 = pneg %p142
      %p285 = pneg %p166
      %p286 = pneg %p163
      %p287 = pneg %p187
      %p288 = pneg %p184
      %p289 = pneg %p213
      %p290 = pneg %p210
      %p291 = scmp.lt.s32.totalorder %s19, 1
      %s292 = scalar_select %p291, %s19, 1
      %s293 = smul.addr %s292, 10
      %s294 = scalar_lea.vmem %s8, %s293
      %p295 = scmp.lt.s32.totalorder %s19, 1
      %s296 = scalar_select %p295, %s19, 1
      %s297 = smul.addr %s296, 8
      %s298 = smul.addr %s297, 4
      %s299 = scalar_lea.vmem %s0, %s298
      %p300 = scmp.lt.s32.totalorder %s19, 1
      %s301 = scalar_select %p300, %s19, 1
      %s302 = smul.addr %s301, 10
      %s303 = scalar_lea.vmem %s8, %s302
      %v305 = vld [vmem:[%s299] sm:$0xf]
      %v306 = vld [vmem:[%s299 + $0x4] sm:$0xf]
      %v307 = vld [vmem:[%s299 + $0x8] sm:$0xf]
      %v308 = vld [vmem:[%s299 + $0xc] sm:$0xf]
      %v309 = vld [vmem:[%s299 + $0x10] sm:$0xf]
      %v310 = vld [vmem:[%s299 + $0x14] sm:$0xf]
      %v311 = vld [vmem:[%s299 + $0x18] sm:$0xf]
      %v312 = vld [vmem:[%s299 + $0x1c] sm:$0xf]
      %v313 = vld [vmem:[%s1] sm:$0xf]
      %v314 = vld [vmem:[%s1 + $0x4] sm:$0xf]
      %v315 = vld [vmem:[%s1 + $0x8] sm:$0xf]
      %v316 = vld [vmem:[%s1 + $0xc] sm:$0xf]
      %v317 = vld [vmem:[%s2] sm:$0x1]
      %v319 = vlaneseq
      %v320 = vshrl.u32 %v319, 7
      %v321 = vsub.s32 0, %v320
      %v322 = vrot.slane %v317, %v321
      %v332 = vunpack.c.l.b16 %v305
      %v333 = vunpack.c.l.b16 %v306
      %v334 = vunpack.c.l.b16 %v307
      %v335 = vunpack.c.l.b16 %v308
      %v336 = vunpack.c.l.b16 %v309
      %v337 = vunpack.c.l.b16 %v310
      %v338 = vunpack.c.l.b16 %v311
      %v339 = vunpack.c.l.b16 %v312
      %v340 = vpack.c.b16 %v333, %v332
      %v341 = vpack.c.b16 %v335, %v334
      %v342 = vpack.c.b16 %v337, %v336
      %v343 = vpack.c.b16 %v339, %v338
      %v348 = vunpack.c.l.b16 %v313
      %v349 = vunpack.c.l.b16 %v314
      %v350 = vunpack.c.l.b16 %v315
      %v351 = vunpack.c.l.b16 %v316
      %v352 = vpack.c.b16 %v349, %v348
      %v353 = vpack.c.b16 %v351, %v350
      %vm356 = vcmask 261120
      %v358 = vsel %vm356, %v340, 0
      %v361 = vsel %vm356, %v341, 0
      %v364 = vsel %vm356, %v342, 0
      %v367 = vsel %vm356, %v343, 0
      %369 = vmatprep.subr.bf16.mxu0 0
      %370 = vmatpush1.bf16.msra.mxu0 %v352
      %371 = vmatprep.subr.bf16.mxu0 0
      %372 = vmatpush1.bf16.msra.mxu0 %v353
      %373 = vmatprep.subr.bf16.mxu0 0
      %374 = vmatpush1.bf16.msra.mxu0 0
      %375 = vmatprep.subr.bf16.mxu0 0
      %376 = vmatpush1.bf16.msra.mxu0 0
      %377 = vmatprep.subr.bf16.mxu0 0
      %378 = vmatpush1.bf16.msra.mxu0 0
      %379 = vmatprep.subr.bf16.mxu0 0
      %380 = vmatpush1.bf16.msra.mxu0 0
      %381 = vmatprep.subr.bf16.mxu0 0
      %382 = vmatpush1.bf16.msra.mxu0 0
      %383 = vmatprep.subr.bf16.mxu0 0
      %384 = vmatpush1.bf16.msra.mxu0 0
      %385 = vmatprep.subr.bf16.mxu0 0
      %386 = vmatpush1.bf16.msra.mxu0 0
      %387 = vmatprep.subr.bf16.mxu0 0
      %388 = vmatpush1.bf16.msra.mxu0 0
      %389 = vmatprep.subr.bf16.mxu0 0
      %390 = vmatpush1.bf16.msra.mxu0 0
      %391 = vmatprep.subr.bf16.mxu0 0
      %392 = vmatpush1.bf16.msra.mxu0 0
      %393 = vmatprep.subr.bf16.mxu0 0
      %394 = vmatpush1.bf16.msra.mxu0 0
      %395 = vmatprep.subr.bf16.mxu0 0
      %396 = vmatpush1.bf16.msra.mxu0 0
      %397 = vmatprep.subr.bf16.mxu0 0
      %398 = vmatpush1.bf16.msra.mxu0 0
      %399 = vmatprep.subr.bf16.mxu0 0
      %400 = vmatpush1.bf16.msra.mxu0 0
      %401 = vmatprep.mubr.bf16.mxu0 0
      %402 = vmatmul.mubr.bf16.gmra.mrb[0].mxu0 %v358
      %v403 = vpop.f32.mrb[0].mxu0
      %v404 = vadd.f32 %v322, %v403
      %v405 = vpop.f32.mrb[0].mxu0
      %v406 = vpop.f32.mrb[0].mxu0
      %v407 = vadd.f32 %v322, %v406
      %v408 = vpop.f32.mrb[0].mxu0
      %409 = vmatprep.mubr.bf16.mxu0 0
      %410 = vmatmul.mubr.bf16.gmra.mrb[0].mxu0 %v361
      %v411 = vpop.f32.mrb[0].mxu0
      %v412 = vadd.f32 %v322, %v411
      %v413 = vpop.f32.mrb[0].mxu0
      %v414 = vpop.f32.mrb[0].mxu0
      %v415 = vadd.f32 %v322, %v414
      %v416 = vpop.f32.mrb[0].mxu0
      %417 = vmatprep.mubr.bf16.mxu0 0
      %418 = vmatmul.mubr.bf16.gmra.mrb[0].mxu0 %v364
      %v419 = vpop.f32.mrb[0].mxu0
      %v420 = vadd.f32 %v322, %v419
      %v421 = vpop.f32.mrb[0].mxu0
      %v422 = vpop.f32.mrb[0].mxu0
      %v423 = vadd.f32 %v322, %v422
      %v424 = vpop.f32.mrb[0].mxu0
      %425 = vmatprep.mubr.bf16.mxu0 0
      %426 = vmatmul.mubr.bf16.gmra.mrb[0].mxu0 %v367
      %v427 = vpop.f32.mrb[0].mxu0
      %v428 = vadd.f32 %v322, %v427
      %v429 = vpop.f32.mrb[0].mxu0
      %v430 = vpop.f32.mrb[0].mxu0
      %v431 = vadd.f32 %v322, %v430
      %v432 = vpop.f32.mrb[0].mxu0
      %433 = vdwg.mxu0
      %v434 = vxor.u32 %v404, 2147483648
      %v435 = vxor.u32 %v407, 2147483648
      %v436 = vxor.u32 %v412, 2147483648
      %v437 = vxor.u32 %v415, 2147483648
      %v438 = vxor.u32 %v420, 2147483648
      %v439 = vxor.u32 %v423, 2147483648
      %v440 = vxor.u32 %v428, 2147483648
      %v441 = vxor.u32 %v431, 2147483648
      %v442 = vmul.f32 %v434, 1.442695
      %v443 = vpow.pop %v442
      %v444 = vmul.f32 %v435, 1.442695
      %v445 = vpow.pop %v444
      %v446 = vmul.f32 %v436, 1.442695
      %v447 = vpow.pop %v446
      %v448 = vmul.f32 %v437, 1.442695
      %v449 = vpow.pop %v448
      %v450 = vmul.f32 %v438, 1.442695
      %v451 = vpow.pop %v450
      %v452 = vmul.f32 %v439, 1.442695
      %v453 = vpow.pop %v452
      %v454 = vmul.f32 %v440, 1.442695
      %v455 = vpow.pop %v454
      %v456 = vmul.f32 %v441, 1.442695
      %v457 = vpow.pop %v456
      %v458 = vadd.f32 %v443, 1.0
      %v459 = vadd.f32 %v445, 1.0
      %v460 = vadd.f32 %v447, 1.0
      %v461 = vadd.f32 %v449, 1.0
      %v462 = vadd.f32 %v451, 1.0
      %v463 = vadd.f32 %v453, 1.0
      %v464 = vadd.f32 %v455, 1.0
      %v465 = vadd.f32 %v457, 1.0
      %v466 = vrcp.pop %v458
      %v467 = vmul.f32 1.0, %v466
      %v468 = vrcp.pop %v459
      %v469 = vmul.f32 1.0, %v468
      %v470 = vrcp.pop %v460
      %v471 = vmul.f32 1.0, %v470
      %v472 = vrcp.pop %v461
      %v473 = vmul.f32 1.0, %v472
      %v474 = vrcp.pop %v462
      %v475 = vmul.f32 1.0, %v474
      %v476 = vrcp.pop %v463
      %v477 = vmul.f32 1.0, %v476
      %v478 = vrcp.pop %v464
      %v479 = vmul.f32 1.0, %v478
      %v480 = vrcp.pop %v465
      %v481 = vmul.f32 1.0, %v480
      %v482 = vmul.f32 %v404, %v467
      %v483 = vmul.f32 %v407, %v469
      %v484 = vmul.f32 %v412, %v471
      %v485 = vmul.f32 %v415, %v473
      %v486 = vmul.f32 %v420, %v475
      %v487 = vmul.f32 %v423, %v477
      %v488 = vmul.f32 %v428, %v479
      %v489 = vmul.f32 %v431, %v481
      %v490 = vrot.slane %v482, 7
      %v491 = vrot.slane %v483, 7
      %v492 = vrot.slane %v484, 7
      %v493 = vrot.slane %v485, 7
      %v494 = vrot.slane %v486, 7
      %v495 = vrot.slane %v487, 7
      %v496 = vrot.slane %v488, 7
      %v497 = vrot.slane %v489, 7
      %v498 = vlaneseq
      %v499 = vshrl.u32 %v498, 7
      %vm500 = vcmp.lt.s32.totalorder %v499, 1
      %v501 = vsel %vm500, %v496, %v497
      %v502 = vsel %vm500, %v495, %v496
      %v503 = vsel %vm500, %v494, %v495
      %v504 = vsel %vm500, %v493, %v494
      %v505 = vsel %vm500, %v492, %v493
      %v506 = vsel %vm500, %v491, %v492
      %v507 = vsel %vm500, %v490, %v491
      %v508 = vsel %vm500, %v497, %v490
      %v509 = vld [vmem:[%s5] sm:$0xff]
      %v510 = vld [vmem:[%s5 + $0x8] sm:$0xff]
      %v511 = vld [vmem:[%s5 + $0x10] sm:$0xff]
      %v512 = vld [vmem:[%s5 + $0x18] sm:$0xff]
      %v513 = vld [vmem:[%s5 + $0x20] sm:$0xff]
      %v514 = vld [vmem:[%s5 + $0x28] sm:$0xff]
      %v515 = vld [vmem:[%s5 + $0x30] sm:$0xff]
      %v516 = vld [vmem:[%s5 + $0x38] sm:$0xff]
      %518 = vset.pattern.permute.xlu0 0
      %519 = vperm.xlu0 %518, %v509
      %v520 = vpop.permute.xlu0 %519
      %523 = vset.pattern.permute.xlu0 0
      %524 = vperm.xlu0 %523, %v510
      %v525 = vpop.permute.xlu0 %524
      %528 = vset.pattern.permute.xlu0 0
      %529 = vperm.xlu0 %528, %v511
      %v530 = vpop.permute.xlu0 %529
      %533 = vset.pattern.permute.xlu0 0
      %534 = vperm.xlu0 %533, %v512
      %v535 = vpop.permute.xlu0 %534
      %538 = vset.pattern.permute.xlu0 0
      %539 = vperm.xlu0 %538, %v513
      %v540 = vpop.permute.xlu0 %539
      %543 = vset.pattern.permute.xlu0 0
      %544 = vperm.xlu0 %543, %v514
      %v545 = vpop.permute.xlu0 %544
      %548 = vset.pattern.permute.xlu0 0
      %549 = vperm.xlu0 %548, %v515
      %v550 = vpop.permute.xlu0 %549
      %553 = vset.pattern.permute.xlu0 0
      %554 = vperm.xlu0 %553, %v516
      %v555 = vpop.permute.xlu0 %554
      %v557 = vmul.f32 %v501, %v520
      %v558 = vmul.f32 %v508, %v525
      %v559 = vmul.f32 %v507, %v530
      %v560 = vmul.f32 %v506, %v535
      %v561 = vmul.f32 %v505, %v540
      %v562 = vmul.f32 %v504, %v545
      %v563 = vmul.f32 %v503, %v550
      %v564 = vmul.f32 %v502, %v555
      %v565 = vld [vmem:[%s3] sm:$0x1]
      %v567 = vlaneseq
      %v568 = vshrl.u32 %v567, 7
      %v569 = vsub.s32 0, %v568
      %v570 = vrot.slane %v565, %v569
      %v572 = vmul.f32 %v557, %v570
      %v573 = vmul.f32 %v558, %v570
      %v574 = vmul.f32 %v559, %v570
      %v575 = vmul.f32 %v560, %v570
      %v576 = vmul.f32 %v561, %v570
      %v577 = vmul.f32 %v562, %v570
      %v578 = vmul.f32 %v563, %v570
      %v579 = vmul.f32 %v564, %v570
      %v580 = vadd.f32 %v572, 0.0
      %v581 = vadd.f32 %v573, 0.0
      %v582 = vadd.f32 %v574, 0.0
      %v583 = vadd.f32 %v575, 0.0
      %v584 = vadd.f32 %v576, 0.0
      %v585 = vadd.f32 %v577, 0.0
      %v586 = vadd.f32 %v578, 0.0
      %v587 = vadd.f32 %v579, 0.0
      %588 = vset.pattern.permute.xlu0 1
      %589 = vperm.xlu0 %588, %v509
      %v590 = vpop.permute.xlu0 %589
      %592 = vset.pattern.permute.xlu0 1
      %593 = vperm.xlu0 %592, %v510
      %v594 = vpop.permute.xlu0 %593
      %596 = vset.pattern.permute.xlu0 1
      %597 = vperm.xlu0 %596, %v511
      %v598 = vpop.permute.xlu0 %597
      %600 = vset.pattern.permute.xlu0 1
      %601 = vperm.xlu0 %600, %v512
      %v602 = vpop.permute.xlu0 %601
      %604 = vset.pattern.permute.xlu0 1
      %605 = vperm.xlu0 %604, %v513
      %v606 = vpop.permute.xlu0 %605
      %608 = vset.pattern.permute.xlu0 1
      %609 = vperm.xlu0 %608, %v514
      %v610 = vpop.permute.xlu0 %609
      %612 = vset.pattern.permute.xlu0 1
      %613 = vperm.xlu0 %612, %v515
      %v614 = vpop.permute.xlu0 %613
      %616 = vset.pattern.permute.xlu0 1
      %617 = vperm.xlu0 %616, %v516
      %v618 = vpop.permute.xlu0 %617
      %v620 = vmul.f32 %v489, %v590
      %v621 = vmul.f32 %v482, %v594
      %v622 = vmul.f32 %v483, %v598
      %v623 = vmul.f32 %v484, %v602
      %v624 = vmul.f32 %v485, %v606
      %v625 = vmul.f32 %v486, %v610
      %v626 = vmul.f32 %v487, %v614
      %v627 = vmul.f32 %v488, %v618
      %s628 = scalar_lea.vmem %s3, 1
      %v629 = vld [vmem:[%s628] sm:$0x1]
      %v631 = vlaneseq
      %v632 = vshrl.u32 %v631, 7
      %v633 = vsub.s32 0, %v632
      %v634 = vrot.slane %v629, %v633
      %v636 = vmul.f32 %v620, %v634
      %v637 = vmul.f32 %v621, %v634
      %v638 = vmul.f32 %v622, %v634
      %v639 = vmul.f32 %v623, %v634
      %v640 = vmul.f32 %v624, %v634
      %v641 = vmul.f32 %v625, %v634
      %v642 = vmul.f32 %v626, %v634
      %v643 = vmul.f32 %v627, %v634
      %v644 = vadd.f32 %v580, %v636
      %v645 = vadd.f32 %v581, %v637
      %v646 = vadd.f32 %v582, %v638
      %v647 = vadd.f32 %v583, %v639
      %v648 = vadd.f32 %v584, %v640
      %v649 = vadd.f32 %v585, %v641
      %v650 = vadd.f32 %v586, %v642
      %v651 = vadd.f32 %v587, %v643
      %v652 = vrot.slane %v482, 1
      %v653 = vrot.slane %v483, 1
      %v654 = vrot.slane %v484, 1
      %v655 = vrot.slane %v485, 1
      %v656 = vrot.slane %v486, 1
      %v657 = vrot.slane %v487, 1
      %v658 = vrot.slane %v488, 1
      %v659 = vrot.slane %v489, 1
      %vm660 = vcmp.lt.s32.totalorder %v499, 7
      %v661 = vsel %vm660, %v658, %v659
      %v662 = vsel %vm660, %v657, %v658
      %v663 = vsel %vm660, %v656, %v657
      %v664 = vsel %vm660, %v655, %v656
      %v665 = vsel %vm660, %v654, %v655
      %v666 = vsel %vm660, %v653, %v654
      %v667 = vsel %vm660, %v652, %v653
      %v668 = vsel %vm660, %v659, %v652
      %669 = vset.pattern.permute.xlu0 2
      %670 = vperm.xlu0 %669, %v509
      %v671 = vpop.permute.xlu0 %670
      %673 = vset.pattern.permute.xlu0 2
      %674 = vperm.xlu0 %673, %v510
      %v675 = vpop.permute.xlu0 %674
      %677 = vset.pattern.permute.xlu0 2
      %678 = vperm.xlu0 %677, %v511
      %v679 = vpop.permute.xlu0 %678
      %681 = vset.pattern.permute.xlu0 2
      %682 = vperm.xlu0 %681, %v512
      %v683 = vpop.permute.xlu0 %682
      %685 = vset.pattern.permute.xlu0 2
      %686 = vperm.xlu0 %685, %v513
      %v687 = vpop.permute.xlu0 %686
      %689 = vset.pattern.permute.xlu0 2
      %690 = vperm.xlu0 %689, %v514
      %v691 = vpop.permute.xlu0 %690
      %693 = vset.pattern.permute.xlu0 2
      %694 = vperm.xlu0 %693, %v515
      %v695 = vpop.permute.xlu0 %694
      %697 = vset.pattern.permute.xlu0 2
      %698 = vperm.xlu0 %697, %v516
      %v699 = vpop.permute.xlu0 %698
      %v701 = vmul.f32 %v668, %v671
      %v702 = vmul.f32 %v667, %v675
      %v703 = vmul.f32 %v666, %v679
      %v704 = vmul.f32 %v665, %v683
      %v705 = vmul.f32 %v664, %v687
      %v706 = vmul.f32 %v663, %v691
      %v707 = vmul.f32 %v662, %v695
      %v708 = vmul.f32 %v661, %v699
      %s709 = scalar_lea.vmem %s3, 2
      %v710 = vld [vmem:[%s709] sm:$0x1]
      %v712 = vlaneseq
      %v713 = vshrl.u32 %v712, 7
      %v714 = vsub.s32 0, %v713
      %v715 = vrot.slane %v710, %v714
      %v717 = vmul.f32 %v701, %v715
      %v718 = vmul.f32 %v702, %v715
      %v719 = vmul.f32 %v703, %v715
      %v720 = vmul.f32 %v704, %v715
      %v721 = vmul.f32 %v705, %v715
      %v722 = vmul.f32 %v706, %v715
      %v723 = vmul.f32 %v707, %v715
      %v724 = vmul.f32 %v708, %v715
      %v725 = vadd.f32 %v644, %v717
      %v726 = vadd.f32 %v645, %v718
      %v727 = vadd.f32 %v646, %v719
      %v728 = vadd.f32 %v647, %v720
      %v729 = vadd.f32 %v648, %v721
      %v730 = vadd.f32 %v649, %v722
      %v731 = vadd.f32 %v650, %v723
      %v732 = vadd.f32 %v651, %v724
      %733 = vset.pattern.permute.xlu0 3
      %734 = vperm.xlu0 %733, %v509
      %v735 = vpop.permute.xlu0 %734
      %737 = vset.pattern.permute.xlu0 3
      %738 = vperm.xlu0 %737, %v510
      %v739 = vpop.permute.xlu0 %738
      %741 = vset.pattern.permute.xlu0 3
      %742 = vperm.xlu0 %741, %v511
      %v743 = vpop.permute.xlu0 %742
      %745 = vset.pattern.permute.xlu0 3
      %746 = vperm.xlu0 %745, %v512
      %v747 = vpop.permute.xlu0 %746
      %749 = vset.pattern.permute.xlu0 3
      %750 = vperm.xlu0 %749, %v513
      %v751 = vpop.permute.xlu0 %750
      %753 = vset.pattern.permute.xlu0 3
      %754 = vperm.xlu0 %753, %v514
      %v755 = vpop.permute.xlu0 %754
      %757 = vset.pattern.permute.xlu0 3
      %758 = vperm.xlu0 %757, %v515
      %v759 = vpop.permute.xlu0 %758
      %761 = vset.pattern.permute.xlu0 3
      %762 = vperm.xlu0 %761, %v516
      %v763 = vpop.permute.xlu0 %762
      %v765 = vmul.f32 %v508, %v735
      %v766 = vmul.f32 %v507, %v739
      %v767 = vmul.f32 %v506, %v743
      %v768 = vmul.f32 %v505, %v747
      %v769 = vmul.f32 %v504, %v751
      %v770 = vmul.f32 %v503, %v755
      %v771 = vmul.f32 %v502, %v759
      %v772 = vmul.f32 %v501, %v763
      %s773 = scalar_lea.vmem %s3, 3
      %v774 = vld [vmem:[%s773] sm:$0x1]
      %v776 = vlaneseq
      %v777 = vshrl.u32 %v776, 7
      %v778 = vsub.s32 0, %v777
      %v779 = vrot.slane %v774, %v778
      %v781 = vmul.f32 %v765, %v779
      %v782 = vmul.f32 %v766, %v779
      %v783 = vmul.f32 %v767, %v779
      %v784 = vmul.f32 %v768, %v779
      %v785 = vmul.f32 %v769, %v779
      %v786 = vmul.f32 %v770, %v779
      %v787 = vmul.f32 %v771, %v779
      %v788 = vmul.f32 %v772, %v779
      %v789 = vadd.f32 %v725, %v781
      %v790 = vadd.f32 %v726, %v782
      %v791 = vadd.f32 %v727, %v783
      %v792 = vadd.f32 %v728, %v784
      %v793 = vadd.f32 %v729, %v785
      %v794 = vadd.f32 %v730, %v786
      %v795 = vadd.f32 %v731, %v787
      %v796 = vadd.f32 %v732, %v788
      %s797 = scalar_lea.vmem %s3, 4
      %v798 = vld [vmem:[%s797] sm:$0x1]
      %v800 = vlaneseq
      %v801 = vshrl.u32 %v800, 7
      %v802 = vsub.s32 0, %v801
      %v803 = vrot.slane %v798, %v802
      %v805 = vmul.f32 %v482, %v803
      %v806 = vmul.f32 %v483, %v803
      %v807 = vmul.f32 %v484, %v803
      %v808 = vmul.f32 %v485, %v803
      %v809 = vmul.f32 %v486, %v803
      %v810 = vmul.f32 %v487, %v803
      %v811 = vmul.f32 %v488, %v803
      %v812 = vmul.f32 %v489, %v803
      %v813 = vadd.f32 %v789, %v805
      %v814 = vadd.f32 %v790, %v806
      %v815 = vadd.f32 %v791, %v807
      %v816 = vadd.f32 %v792, %v808
      %v817 = vadd.f32 %v793, %v809
      %v818 = vadd.f32 %v794, %v810
      %v819 = vadd.f32 %v795, %v811
      %v820 = vadd.f32 %v796, %v812
      %821 = vset.pattern.permute.xlu0 5
      %822 = vperm.xlu0 %821, %v509
      %v823 = vpop.permute.xlu0 %822
      %825 = vset.pattern.permute.xlu0 5
      %826 = vperm.xlu0 %825, %v510
      %v827 = vpop.permute.xlu0 %826
      %829 = vset.pattern.permute.xlu0 5
      %830 = vperm.xlu0 %829, %v511
      %v831 = vpop.permute.xlu0 %830
      %833 = vset.pattern.permute.xlu0 5
      %834 = vperm.xlu0 %833, %v512
      %v835 = vpop.permute.xlu0 %834
      %837 = vset.pattern.permute.xlu0 5
      %838 = vperm.xlu0 %837, %v513
      %v839 = vpop.permute.xlu0 %838
      %841 = vset.pattern.permute.xlu0 5
      %842 = vperm.xlu0 %841, %v514
      %v843 = vpop.permute.xlu0 %842
      %845 = vset.pattern.permute.xlu0 5
      %846 = vperm.xlu0 %845, %v515
      %v847 = vpop.permute.xlu0 %846
      %849 = vset.pattern.permute.xlu0 5
      %850 = vperm.xlu0 %849, %v516
      %v851 = vpop.permute.xlu0 %850
      %v853 = vmul.f32 %v667, %v823
      %v854 = vmul.f32 %v666, %v827
      %v855 = vmul.f32 %v665, %v831
      %v856 = vmul.f32 %v664, %v835
      %v857 = vmul.f32 %v663, %v839
      %v858 = vmul.f32 %v662, %v843
      %v859 = vmul.f32 %v661, %v847
      %v860 = vmul.f32 %v668, %v851
      %s861 = scalar_lea.vmem %s3, 5
      %v862 = vld [vmem:[%s861] sm:$0x1]
      %v864 = vlaneseq
      %v865 = vshrl.u32 %v864, 7
      %v866 = vsub.s32 0, %v865
      %v867 = vrot.slane %v862, %v866
      %v869 = vmul.f32 %v853, %v867
      %v870 = vmul.f32 %v854, %v867
      %v871 = vmul.f32 %v855, %v867
      %v872 = vmul.f32 %v856, %v867
      %v873 = vmul.f32 %v857, %v867
      %v874 = vmul.f32 %v858, %v867
      %v875 = vmul.f32 %v859, %v867
      %v876 = vmul.f32 %v860, %v867
      %v877 = vadd.f32 %v813, %v869
      %v878 = vadd.f32 %v814, %v870
      %v879 = vadd.f32 %v815, %v871
      %v880 = vadd.f32 %v816, %v872
      %v881 = vadd.f32 %v817, %v873
      %v882 = vadd.f32 %v818, %v874
      %v883 = vadd.f32 %v819, %v875
      %v884 = vadd.f32 %v820, %v876
      %885 = vset.pattern.permute.xlu0 6
      %886 = vperm.xlu0 %885, %v509
      %v887 = vpop.permute.xlu0 %886
      %889 = vset.pattern.permute.xlu0 6
      %890 = vperm.xlu0 %889, %v510
      %v891 = vpop.permute.xlu0 %890
      %893 = vset.pattern.permute.xlu0 6
      %894 = vperm.xlu0 %893, %v511
      %v895 = vpop.permute.xlu0 %894
      %897 = vset.pattern.permute.xlu0 6
      %898 = vperm.xlu0 %897, %v512
      %v899 = vpop.permute.xlu0 %898
      %901 = vset.pattern.permute.xlu0 6
      %902 = vperm.xlu0 %901, %v513
      %v903 = vpop.permute.xlu0 %902
      %905 = vset.pattern.permute.xlu0 6
      %906 = vperm.xlu0 %905, %v514
      %v907 = vpop.permute.xlu0 %906
      %909 = vset.pattern.permute.xlu0 6
      %910 = vperm.xlu0 %909, %v515
      %v911 = vpop.permute.xlu0 %910
      %913 = vset.pattern.permute.xlu0 6
      %914 = vperm.xlu0 %913, %v516
      %v915 = vpop.permute.xlu0 %914
      %v917 = vmul.f32 %v507, %v887
      %v918 = vmul.f32 %v506, %v891
      %v919 = vmul.f32 %v505, %v895
      %v920 = vmul.f32 %v504, %v899
      %v921 = vmul.f32 %v503, %v903
      %v922 = vmul.f32 %v502, %v907
      %v923 = vmul.f32 %v501, %v911
      %v924 = vmul.f32 %v508, %v915
      %s925 = scalar_lea.vmem %s3, 6
      %v926 = vld [vmem:[%s925] sm:$0x1]
      %v928 = vlaneseq
      %v929 = vshrl.u32 %v928, 7
      %v930 = vsub.s32 0, %v929
      %v931 = vrot.slane %v926, %v930
      %v933 = vmul.f32 %v917, %v931
      %v934 = vmul.f32 %v918, %v931
      %v935 = vmul.f32 %v919, %v931
      %v936 = vmul.f32 %v920, %v931
      %v937 = vmul.f32 %v921, %v931
      %v938 = vmul.f32 %v922, %v931
      %v939 = vmul.f32 %v923, %v931
      %v940 = vmul.f32 %v924, %v931
      %v941 = vadd.f32 %v877, %v933
      %v942 = vadd.f32 %v878, %v934
      %v943 = vadd.f32 %v879, %v935
      %v944 = vadd.f32 %v880, %v936
      %v945 = vadd.f32 %v881, %v937
      %v946 = vadd.f32 %v882, %v938
      %v947 = vadd.f32 %v883, %v939
      %v948 = vadd.f32 %v884, %v940
      %949 = vset.pattern.permute.xlu0 7
      %950 = vperm.xlu0 %949, %v509
      %v951 = vpop.permute.xlu0 %950
      %953 = vset.pattern.permute.xlu0 7
      %954 = vperm.xlu0 %953, %v510
      %v955 = vpop.permute.xlu0 %954
      %957 = vset.pattern.permute.xlu0 7
      %958 = vperm.xlu0 %957, %v511
      %v959 = vpop.permute.xlu0 %958
      %961 = vset.pattern.permute.xlu0 7
      %962 = vperm.xlu0 %961, %v512
      %v963 = vpop.permute.xlu0 %962
      %965 = vset.pattern.permute.xlu0 7
      %966 = vperm.xlu0 %965, %v513
      %v967 = vpop.permute.xlu0 %966
      %969 = vset.pattern.permute.xlu0 7
      %970 = vperm.xlu0 %969, %v514
      %v971 = vpop.permute.xlu0 %970
      %973 = vset.pattern.permute.xlu0 7
      %974 = vperm.xlu0 %973, %v515
      %v975 = vpop.permute.xlu0 %974
      %977 = vset.pattern.permute.xlu0 7
      %978 = vperm.xlu0 %977, %v516
      %v979 = vpop.permute.xlu0 %978
      %v981 = vmul.f32 %v483, %v951
      %v982 = vmul.f32 %v484, %v955
      %v983 = vmul.f32 %v485, %v959
      %v984 = vmul.f32 %v486, %v963
      %v985 = vmul.f32 %v487, %v967
      %v986 = vmul.f32 %v488, %v971
      %v987 = vmul.f32 %v489, %v975
      %v988 = vmul.f32 %v482, %v979
      %s989 = scalar_lea.vmem %s3, 7
      %v990 = vld [vmem:[%s989] sm:$0x1]
      %v992 = vlaneseq
      %v993 = vshrl.u32 %v992, 7
      %v994 = vsub.s32 0, %v993
      %v995 = vrot.slane %v990, %v994
      %v997 = vmul.f32 %v981, %v995
      %v998 = vmul.f32 %v982, %v995
      %v999 = vmul.f32 %v983, %v995
      %v1000 = vmul.f32 %v984, %v995
      %v1001 = vmul.f32 %v985, %v995
      %v1002 = vmul.f32 %v986, %v995
      %v1003 = vmul.f32 %v987, %v995
      %v1004 = vmul.f32 %v988, %v995
      %v1005 = vadd.f32 %v941, %v997
      %v1006 = vadd.f32 %v942, %v998
      %v1007 = vadd.f32 %v943, %v999
      %v1008 = vadd.f32 %v944, %v1000
      %v1009 = vadd.f32 %v945, %v1001
      %v1010 = vadd.f32 %v946, %v1002
      %v1011 = vadd.f32 %v947, %v1003
      %v1012 = vadd.f32 %v948, %v1004
      %1013 = vset.pattern.permute.xlu0 8
      %1014 = vperm.xlu0 %1013, %v509
      %v1015 = vpop.permute.xlu0 %1014
      %1017 = vset.pattern.permute.xlu0 8
      %1018 = vperm.xlu0 %1017, %v510
      %v1019 = vpop.permute.xlu0 %1018
      %1021 = vset.pattern.permute.xlu0 8
      %1022 = vperm.xlu0 %1021, %v511
      %v1023 = vpop.permute.xlu0 %1022
      %1025 = vset.pattern.permute.xlu0 8
      %1026 = vperm.xlu0 %1025, %v512
      %v1027 = vpop.permute.xlu0 %1026
      %1029 = vset.pattern.permute.xlu0 8
      %1030 = vperm.xlu0 %1029, %v513
      %v1031 = vpop.permute.xlu0 %1030
      %1033 = vset.pattern.permute.xlu0 8
      %1034 = vperm.xlu0 %1033, %v514
      %v1035 = vpop.permute.xlu0 %1034
      %1037 = vset.pattern.permute.xlu0 8
      %1038 = vperm.xlu0 %1037, %v515
      %v1039 = vpop.permute.xlu0 %1038
      %1041 = vset.pattern.permute.xlu0 8
      %1042 = vperm.xlu0 %1041, %v516
      %v1043 = vpop.permute.xlu0 %1042
      %v1045 = vmul.f32 %v666, %v1015
      %v1046 = vmul.f32 %v665, %v1019
      %v1047 = vmul.f32 %v664, %v1023
      %v1048 = vmul.f32 %v663, %v1027
      %v1049 = vmul.f32 %v662, %v1031
      %v1050 = vmul.f32 %v661, %v1035
      %v1051 = vmul.f32 %v668, %v1039
      %v1052 = vmul.f32 %v667, %v1043
      %s1053 = scalar_lea.vmem %s3, 8
      %v1054 = vld [vmem:[%s1053] sm:$0x1]
      %v1056 = vlaneseq
      %v1057 = vshrl.u32 %v1056, 7
      %v1058 = vsub.s32 0, %v1057
      %v1059 = vrot.slane %v1054, %v1058
      %v1061 = vmul.f32 %v1045, %v1059
      %v1062 = vmul.f32 %v1046, %v1059
      %v1063 = vmul.f32 %v1047, %v1059
      %v1064 = vmul.f32 %v1048, %v1059
      %v1065 = vmul.f32 %v1049, %v1059
      %v1066 = vmul.f32 %v1050, %v1059
      %v1067 = vmul.f32 %v1051, %v1059
      %v1068 = vmul.f32 %v1052, %v1059
      %v1069 = vadd.f32 %v1005, %v1061
      %v1070 = vadd.f32 %v1006, %v1062
      %v1071 = vadd.f32 %v1007, %v1063
      %v1072 = vadd.f32 %v1008, %v1064
      %v1073 = vadd.f32 %v1009, %v1065
      %v1074 = vadd.f32 %v1010, %v1066
      %v1075 = vadd.f32 %v1011, %v1067
      %v1076 = vadd.f32 %v1012, %v1068
      %v1077 = vld [vmem:[%s4] sm:$0x1]
      %v1079 = vlaneseq
      %v1080 = vshrl.u32 %v1079, 7
      %v1081 = vsub.s32 0, %v1080
      %v1082 = vrot.slane %v1077, %v1081
      %v1084 = vadd.f32 %v1069, %v1082
      %v1085 = vadd.f32 %v1070, %v1082
      %v1086 = vadd.f32 %v1071, %v1082
      %v1087 = vadd.f32 %v1072, %v1082
      %v1088 = vadd.f32 %v1073, %v1082
      %v1089 = vadd.f32 %v1074, %v1082
      %v1090 = vadd.f32 %v1075, %v1082
      %v1091 = vadd.f32 %v1076, %v1082
      %v1092 = vxor.u32 %v1084, 2147483648
      %v1093 = vxor.u32 %v1085, 2147483648
      %v1094 = vxor.u32 %v1086, 2147483648
      %v1095 = vxor.u32 %v1087, 2147483648
      %v1096 = vxor.u32 %v1088, 2147483648
      %v1097 = vxor.u32 %v1089, 2147483648
      %v1098 = vxor.u32 %v1090, 2147483648
      %v1099 = vxor.u32 %v1091, 2147483648
      %v1100 = vmul.f32 %v1092, 1.442695
      %v1101 = vpow.pop %v1100
      %v1102 = vmul.f32 %v1093, 1.442695
      %v1103 = vpow.pop %v1102
      %v1104 = vmul.f32 %v1094, 1.442695
      %v1105 = vpow.pop %v1104
      %v1106 = vmul.f32 %v1095, 1.442695
      %v1107 = vpow.pop %v1106
      %v1108 = vmul.f32 %v1096, 1.442695
      %v1109 = vpow.pop %v1108
      %v1110 = vmul.f32 %v1097, 1.442695
      %v1111 = vpow.pop %v1110
      %v1112 = vmul.f32 %v1098, 1.442695
      %v1113 = vpow.pop %v1112
      %v1114 = vmul.f32 %v1099, 1.442695
      %v1115 = vpow.pop %v1114
      %v1116 = vadd.f32 %v1101, 1.0
      %v1117 = vadd.f32 %v1103, 1.0
      %v1118 = vadd.f32 %v1105, 1.0
      %v1119 = vadd.f32 %v1107, 1.0
      %v1120 = vadd.f32 %v1109, 1.0
      %v1121 = vadd.f32 %v1111, 1.0
      %v1122 = vadd.f32 %v1113, 1.0
      %v1123 = vadd.f32 %v1115, 1.0
      %v1124 = vrcp.pop %v1116
      %v1125 = vmul.f32 1.0, %v1124
      %v1126 = vrcp.pop %v1117
      %v1127 = vmul.f32 1.0, %v1126
      %v1128 = vrcp.pop %v1118
      %v1129 = vmul.f32 1.0, %v1128
      %v1130 = vrcp.pop %v1119
      %v1131 = vmul.f32 1.0, %v1130
      %v1132 = vrcp.pop %v1120
      %v1133 = vmul.f32 1.0, %v1132
      %v1134 = vrcp.pop %v1121
      %v1135 = vmul.f32 1.0, %v1134
      %v1136 = vrcp.pop %v1122
      %v1137 = vmul.f32 1.0, %v1136
      %v1138 = vrcp.pop %v1123
      %v1139 = vmul.f32 1.0, %v1138
      %v1140 = vmul.f32 %v1084, %v1125
      %v1141 = vmul.f32 %v1085, %v1127
      %v1142 = vmul.f32 %v1086, %v1129
      %v1143 = vmul.f32 %v1087, %v1131
      %v1144 = vmul.f32 %v1088, %v1133
      %v1145 = vmul.f32 %v1089, %v1135
      %v1146 = vmul.f32 %v1090, %v1137
      %v1147 = vmul.f32 %v1091, %v1139
      %v1148 = vpack.c.bf16 %v1141, %v1140
      %v1149 = vpack.c.bf16 %v1143, %v1142
      %v1150 = vpack.c.bf16 %v1145, %v1144
      %v1151 = vpack.c.bf16 %v1147, %v1146
      %1152 = vst.msk [vmem:[#allocation2] sm:$0xff] %vm356, %v1148
      %1153 = vst.msk [vmem:[#allocation2 + $0x8] sm:$0xff] %vm356, %v1149
      %1154 = vst.msk [vmem:[#allocation2 + $0x10] sm:$0xff] %vm356, %v1150
      %1155 = vst.msk [vmem:[#allocation2 + $0x18] sm:$0xff] %vm356, %v1151
      %v1156 = vld [vmem:[%s6] sm:$0xff]
      %v1157 = vld [vmem:[%s6 + $0x8] sm:$0xff]
      %v1158 = vld [vmem:[%s6 + $0x10] sm:$0xff]
      %v1159 = vld [vmem:[%s6 + $0x18] sm:$0xff]
      %v1160 = vld [vmem:[%s6 + $0x20] sm:$0xff]
      %v1161 = vld [vmem:[%s6 + $0x28] sm:$0xff]
      %v1162 = vld [vmem:[%s6 + $0x30] sm:$0xff]
      %v1163 = vld [vmem:[%s6 + $0x38] sm:$0xff]
      %v1164 = vld [vmem:[%s6 + $0x40] sm:$0xff]
      %v1165 = vld [vmem:[%s6 + $0x48] sm:$0xff]
      %v1166 = vld [vmem:[%s6 + $0x50] sm:$0xff]
      %v1167 = vld [vmem:[%s6 + $0x58] sm:$0xff]
      %v1168 = vld [vmem:[%s6 + $0x60] sm:$0xff]
      %v1169 = vld [vmem:[%s6 + $0x68] sm:$0xff]
      %v1170 = vld [vmem:[%s6 + $0x70] sm:$0xff]
      %v1171 = vld [vmem:[%s6 + $0x78] sm:$0xff]
      %v1172 = vld [vmem:[%s6 + $0x80] sm:$0xff]
      %v1173 = vld [vmem:[%s6 + $0x88] sm:$0xff]
      %v1174 = vld [vmem:[%s6 + $0x90] sm:$0xff]
      %v1175 = vld [vmem:[%s6 + $0x98] sm:$0xff]
      %v1176 = vld [vmem:[%s7] sm:$0xff]
      %v1177 = vld [vmem:[%s7 + $0x8] sm:$0x3]
      %v1178 = vld [vmem:[#allocation2] sm:$0xff]
      %v1179 = vld [vmem:[#allocation2 + $0x8] sm:$0xff]
      %v1180 = vld [vmem:[#allocation2 + $0x10] sm:$0xff]
      %v1181 = vld [vmem:[#allocation2 + $0x18] sm:$0xff]
      %v1184 = vlaneseq
      %v1185 = vshrl.u32 %v1184, 7
      %v1186 = vsub.s32 0, %v1185
      %v1187 = vrot.slane %v1176, %v1186
      %v1188 = vlaneseq
      %v1189 = vshrl.u32 %v1188, 7
      %v1190 = vsub.s32 1, %v1189
      %v1191 = vrot.slane %v1176, %v1190
      %v1192 = vlaneseq
      %v1193 = vshrl.u32 %v1192, 7
      %v1194 = vsub.s32 2, %v1193
      %v1195 = vrot.slane %v1176, %v1194
      %v1196 = vlaneseq
      %v1197 = vshrl.u32 %v1196, 7
      %v1198 = vsub.s32 3, %v1197
      %v1199 = vrot.slane %v1176, %v1198
      %v1200 = vlaneseq
      %v1201 = vshrl.u32 %v1200, 7
      %v1202 = vsub.s32 4, %v1201
      %v1203 = vrot.slane %v1176, %v1202
      %v1204 = vlaneseq
      %v1205 = vshrl.u32 %v1204, 7
      %v1206 = vsub.s32 5, %v1205
      %v1207 = vrot.slane %v1176, %v1206
      %v1208 = vlaneseq
      %v1209 = vshrl.u32 %v1208, 7
      %v1210 = vsub.s32 6, %v1209
      %v1211 = vrot.slane %v1176, %v1210
      %v1212 = vlaneseq
      %v1213 = vshrl.u32 %v1212, 7
      %v1214 = vsub.s32 7, %v1213
      %v1215 = vrot.slane %v1176, %v1214
      %v1216 = vlaneseq
      %v1217 = vshrl.u32 %v1216, 7
      %v1218 = vsub.s32 0, %v1217
      %v1219 = vrot.slane %v1177, %v1218
      %v1220 = vlaneseq
      %v1221 = vshrl.u32 %v1220, 7
      %v1222 = vsub.s32 1, %v1221
      %v1223 = vrot.slane %v1177, %v1222
      %v1254 = vunpack.c.l.b16 %v1156
      %v1255 = vunpack.c.h.b16 %v1156
      %v1256 = vunpack.c.l.b16 %v1157
      %v1257 = vunpack.c.h.b16 %v1157
      %v1258 = vunpack.c.l.b16 %v1158
      %v1259 = vunpack.c.h.b16 %v1158
      %v1260 = vunpack.c.l.b16 %v1159
      %v1261 = vunpack.c.h.b16 %v1159
      %v1262 = vunpack.c.l.b16 %v1160
      %v1263 = vunpack.c.h.b16 %v1160
      %v1264 = vunpack.c.l.b16 %v1161
      %v1265 = vunpack.c.h.b16 %v1161
      %v1266 = vunpack.c.l.b16 %v1162
      %v1267 = vunpack.c.h.b16 %v1162
      %v1268 = vunpack.c.l.b16 %v1163
      %v1269 = vunpack.c.h.b16 %v1163
      %v1270 = vunpack.c.l.b16 %v1164
      %v1271 = vunpack.c.h.b16 %v1164
      %v1272 = vunpack.c.l.b16 %v1165
      %v1273 = vunpack.c.h.b16 %v1165
      %v1274 = vunpack.c.l.b16 %v1166
      %v1275 = vunpack.c.h.b16 %v1166
      %v1276 = vunpack.c.l.b16 %v1167
      %v1277 = vunpack.c.h.b16 %v1167
      %v1278 = vunpack.c.l.b16 %v1168
      %v1279 = vunpack.c.h.b16 %v1168
      %v1280 = vunpack.c.l.b16 %v1169
      %v1281 = vunpack.c.h.b16 %v1169
      %v1282 = vunpack.c.l.b16 %v1170
      %v1283 = vunpack.c.h.b16 %v1170
      %v1284 = vunpack.c.l.b16 %v1171
      %v1285 = vunpack.c.h.b16 %v1171
      %v1286 = vunpack.c.l.b16 %v1172
      %v1287 = vunpack.c.h.b16 %v1172
      %v1288 = vunpack.c.l.b16 %v1173
      %v1289 = vunpack.c.h.b16 %v1173
      %v1290 = vunpack.c.l.b16 %v1174
      %v1291 = vunpack.c.h.b16 %v1174
      %v1292 = vunpack.c.l.b16 %v1175
      %v1293 = vunpack.c.h.b16 %v1175
      %v1294 = vpack.c.b16 %v1264, %v1254
      %v1295 = vpack.c.b16 %v1265, %v1255
      %v1296 = vpack.c.b16 %v1266, %v1256
      %v1297 = vpack.c.b16 %v1267, %v1257
      %v1298 = vpack.c.b16 %v1268, %v1258
      %v1299 = vpack.c.b16 %v1269, %v1259
      %v1300 = vpack.c.b16 %v1270, %v1260
      %v1301 = vpack.c.b16 %v1271, %v1261
      %v1302 = vpack.c.b16 %v1272, %v1262
      %v1303 = vpack.c.b16 %v1273, %v1263
      %v1304 = vpack.c.b16 %v1284, %v1274
      %v1305 = vpack.c.b16 %v1285, %v1275
      %v1306 = vpack.c.b16 %v1286, %v1276
      %v1307 = vpack.c.b16 %v1287, %v1277
      %v1308 = vpack.c.b16 %v1288, %v1278
      %v1309 = vpack.c.b16 %v1289, %v1279
      %v1310 = vpack.c.b16 %v1290, %v1280
      %v1311 = vpack.c.b16 %v1291, %v1281
      %v1312 = vpack.c.b16 %v1292, %v1282
      %v1313 = vpack.c.b16 %v1293, %v1283
      %v1335 = vsel %vm356, %v1178, 0
      %v1338 = vsel %vm356, %v1179, 0
      %v1341 = vsel %vm356, %v1180, 0
      %v1344 = vsel %vm356, %v1181, 0
      %1346 = vmatprep.subr.bf16.mxu0 %v1295
      %1347 = vmatpush1.bf16.msra.mxu0 %v1294
      %1348 = vmatprep.subr.bf16.mxu0 %v1305
      %1349 = vmatpush1.bf16.msra.mxu0 %v1304
      %1350 = vmatprep.subr.bf16.mxu0 0
      %1351 = vmatpush1.bf16.msra.mxu0 0
      %1352 = vmatprep.subr.bf16.mxu0 0
      %1353 = vmatpush1.bf16.msra.mxu0 0
      %1354 = vmatprep.subr.bf16.mxu0 0
      %1355 = vmatpush1.bf16.msra.mxu0 0
      %1356 = vmatprep.subr.bf16.mxu0 0
      %1357 = vmatpush1.bf16.msra.mxu0 0
      %1358 = vmatprep.subr.bf16.mxu0 0
      %1359 = vmatpush1.bf16.msra.mxu0 0
      %1360 = vmatprep.subr.bf16.mxu0 0
      %1361 = vmatpush1.bf16.msra.mxu0 0
      %1362 = vmatprep.subr.bf16.mxu0 0
      %1363 = vmatpush1.bf16.msra.mxu0 0
      %1364 = vmatprep.subr.bf16.mxu0 0
      %1365 = vmatpush1.bf16.msra.mxu0 0
      %1366 = vmatprep.subr.bf16.mxu0 0
      %1367 = vmatpush1.bf16.msra.mxu0 0
      %1368 = vmatprep.subr.bf16.mxu0 0
      %1369 = vmatpush1.bf16.msra.mxu0 0
      %1370 = vmatprep.subr.bf16.mxu0 0
      %1371 = vmatpush1.bf16.msra.mxu0 0
      %1372 = vmatprep.subr.bf16.mxu0 0
      %1373 = vmatpush1.bf16.msra.mxu0 0
      %1374 = vmatprep.subr.bf16.mxu0 0
      %1375 = vmatpush1.bf16.msra.mxu0 0
      %1376 = vmatprep.subr.bf16.mxu0 0
      %1377 = vmatpush1.bf16.msra.mxu0 0
      %1378 = vmatprep.mubr.bf16.mxu0 0
      %1379 = vmatmul.mubr.bf16.gmra.mrb[0].mxu0 %v1335
      %v1380 = vpop.f32.mrb[0].mxu0
      %v1381 = vadd.f32 %v1187, %v1380
      %v1382 = vpop.f32.mrb[0].mxu0
      %v1383 = vadd.f32 %v1191, %v1382
      %v1384 = vpop.f32.mrb[0].mxu0
      %v1385 = vadd.f32 %v1187, %v1384
      %v1386 = vpop.f32.mrb[0].mxu0
      %v1387 = vadd.f32 %v1191, %v1386
      %1388 = vmatprep.mubr.bf16.mxu0 0
      %1389 = vmatmul.mubr.bf16.gmra.mrb[0].mxu0 %v1338
      %v1390 = vpop.f32.mrb[0].mxu0
      %v1391 = vadd.f32 %v1187, %v1390
      %v1392 = vpop.f32.mrb[0].mxu0
      %v1393 = vadd.f32 %v1191, %v1392
      %v1394 = vpop.f32.mrb[0].mxu0
      %v1395 = vadd.f32 %v1187, %v1394
      %v1396 = vpop.f32.mrb[0].mxu0
      %v1397 = vadd.f32 %v1191, %v1396
      %1398 = vmatprep.mubr.bf16.mxu0 0
      %1399 = vmatmul.mubr.bf16.gmra.mrb[0].mxu0 %v1341
      %v1400 = vpop.f32.mrb[0].mxu0
      %v1401 = vadd.f32 %v1187, %v1400
      %v1402 = vpop.f32.mrb[0].mxu0
      %v1403 = vadd.f32 %v1191, %v1402
      %v1404 = vpop.f32.mrb[0].mxu0
      %v1405 = vadd.f32 %v1187, %v1404
      %v1406 = vpop.f32.mrb[0].mxu0
      %v1407 = vadd.f32 %v1191, %v1406
      %1408 = vmatprep.mubr.bf16.mxu0 0
      %1409 = vmatmul.mubr.bf16.gmra.mrb[0].mxu0 %v1344
      %v1410 = vpop.f32.mrb[0].mxu0
      %v1411 = vadd.f32 %v1187, %v1410
      %v1412 = vpop.f32.mrb[0].mxu0
      %v1413 = vadd.f32 %v1191, %v1412
      %v1414 = vpop.f32.mrb[0].mxu0
      %v1415 = vadd.f32 %v1187, %v1414
      %v1416 = vpop.f32.mrb[0].mxu0
      %v1417 = vadd.f32 %v1191, %v1416
      %1418 = vdwg.mxu0
      %1419 = vmatprep.subr.bf16.mxu0 %v1297
      %1420 = vmatpush1.bf16.msra.mxu0 %v1296
      %1421 = vmatprep.subr.bf16.mxu0 %v1307
      %1422 = vmatpush1.bf16.msra.mxu0 %v1306
      %1423 = vmatprep.subr.bf16.mxu0 0
      %1424 = vmatpush1.bf16.msra.mxu0 0
      %1425 = vmatprep.subr.bf16.mxu0 0
      %1426 = vmatpush1.bf16.msra.mxu0 0
      %1427 = vmatprep.subr.bf16.mxu0 0
      %1428 = vmatpush1.bf16.msra.mxu0 0
      %1429 = vmatprep.subr.bf16.mxu0 0
      %1430 = vmatpush1.bf16.msra.mxu0 0
      %1431 = vmatprep.subr.bf16.mxu0 0
      %1432 = vmatpush1.bf16.msra.mxu0 0
      %1433 = vmatprep.subr.bf16.mxu0 0
      %1434 = vmatpush1.bf16.msra.mxu0 0
      %1435 = vmatprep.subr.bf16.mxu0 0
      %1436 = vmatpush1.bf16.msra.mxu0 0
      %1437 = vmatprep.subr.bf16.mxu0 0
      %1438 = vmatpush1.bf16.msra.mxu0 0
      %1439 = vmatprep.subr.bf16.mxu0 0
      %1440 = vmatpush1.bf16.msra.mxu0 0
      %1441 = vmatprep.subr.bf16.mxu0 0
      %1442 = vmatpush1.bf16.msra.mxu0 0
      %1443 = vmatprep.subr.bf16.mxu0 0
      %1444 = vmatpush1.bf16.msra.mxu0 0
      %1445 = vmatprep.subr.bf16.mxu0 0
      %1446 = vmatpush1.bf16.msra.mxu0 0
      %1447 = vmatprep.subr.bf16.mxu0 0
      %1448 = vmatpush1.bf16.msra.mxu0 0
      %1449 = vmatprep.subr.bf16.mxu0 0
      %1450 = vmatpush1.bf16.msra.mxu0 0
      %1451 = vmatprep.mubr.bf16.mxu0 0
      %1452 = vmatmul.mubr.bf16.gmra.mrb[0].mxu0 %v1335
      %v1453 = vpop.f32.mrb[0].mxu0
      %v1454 = vadd.f32 %v1195, %v1453
      %v1455 = vpop.f32.mrb[0].mxu0
      %v1456 = vadd.f32 %v1199, %v1455
      %v1457 = vpop.f32.mrb[0].mxu0
      %v1458 = vadd.f32 %v1195, %v1457
      %v1459 = vpop.f32.mrb[0].mxu0
      %v1460 = vadd.f32 %v1199, %v1459
      %1461 = vmatprep.mubr.bf16.mxu0 0
      %1462 = vmatmul.mubr.bf16.gmra.mrb[0].mxu0 %v1338
      %v1463 = vpop.f32.mrb[0].mxu0
      %v1464 = vadd.f32 %v1195, %v1463
      %v1465 = vpop.f32.mrb[0].mxu0
      %v1466 = vadd.f32 %v1199, %v1465
      %v1467 = vpop.f32.mrb[0].mxu0
      %v1468 = vadd.f32 %v1195, %v1467
      %v1469 = vpop.f32.mrb[0].mxu0
      %v1470 = vadd.f32 %v1199, %v1469
      %1471 = vmatprep.mubr.bf16.mxu0 0
      %1472 = vmatmul.mubr.bf16.gmra.mrb[0].mxu0 %v1341
      %v1473 = vpop.f32.mrb[0].mxu0
      %v1474 = vadd.f32 %v1195, %v1473
      %v1475 = vpop.f32.mrb[0].mxu0
      %v1476 = vadd.f32 %v1199, %v1475
      %v1477 = vpop.f32.mrb[0].mxu0
      %v1478 = vadd.f32 %v1195, %v1477
      %v1479 = vpop.f32.mrb[0].mxu0
      %v1480 = vadd.f32 %v1199, %v1479
      %1481 = vmatprep.mubr.bf16.mxu0 0
      %1482 = vmatmul.mubr.bf16.gmra.mrb[0].mxu0 %v1344
      %v1483 = vpop.f32.mrb[0].mxu0
      %v1484 = vadd.f32 %v1195, %v1483
      %v1485 = vpop.f32.mrb[0].mxu0
      %v1486 = vadd.f32 %v1199, %v1485
      %v1487 = vpop.f32.mrb[0].mxu0
      %v1488 = vadd.f32 %v1195, %v1487
      %v1489 = vpop.f32.mrb[0].mxu0
      %v1490 = vadd.f32 %v1199, %v1489
      %1491 = vdwg.mxu0
      %1492 = vmatprep.subr.bf16.mxu0 %v1299
      %1493 = vmatpush1.bf16.msra.mxu0 %v1298
      %1494 = vmatprep.subr.bf16.mxu0 %v1309
      %1495 = vmatpush1.bf16.msra.mxu0 %v1308
      %1496 = vmatprep.subr.bf16.mxu0 0
      %1497 = vmatpush1.bf16.msra.mxu0 0
      %1498 = vmatprep.subr.bf16.mxu0 0
      %1499 = vmatpush1.bf16.msra.mxu0 0
      %1500 = vmatprep.subr.bf16.mxu0 0
      %1501 = vmatpush1.bf16.msra.mxu0 0
      %1502 = vmatprep.subr.bf16.mxu0 0
      %1503 = vmatpush1.bf16.msra.mxu0 0
      %1504 = vmatprep.subr.bf16.mxu0 0
      %1505 = vmatpush1.bf16.msra.mxu0 0
      %1506 = vmatprep.subr.bf16.mxu0 0
      %1507 = vmatpush1.bf16.msra.mxu0 0
      %1508 = vmatprep.subr.bf16.mxu0 0
      %1509 = vmatpush1.bf16.msra.mxu0 0
      %1510 = vmatprep.subr.bf16.mxu0 0
      %1511 = vmatpush1.bf16.msra.mxu0 0
      %1512 = vmatprep.subr.bf16.mxu0 0
      %1513 = vmatpush1.bf16.msra.mxu0 0
      %1514 = vmatprep.subr.bf16.mxu0 0
      %1515 = vmatpush1.bf16.msra.mxu0 0
      %1516 = vmatprep.subr.bf16.mxu0 0
      %1517 = vmatpush1.bf16.msra.mxu0 0
      %1518 = vmatprep.subr.bf16.mxu0 0
      %1519 = vmatpush1.bf16.msra.mxu0 0
      %1520 = vmatprep.subr.bf16.mxu0 0
      %1521 = vmatpush1.bf16.msra.mxu0 0
      %1522 = vmatprep.subr.bf16.mxu0 0
      %1523 = vmatpush1.bf16.msra.mxu0 0
      %1524 = vmatprep.mubr.bf16.mxu0 0
      %1525 = vmatmul.mubr.bf16.gmra.mrb[0].mxu0 %v1335
      %v1526 = vpop.f32.mrb[0].mxu0
      %v1527 = vadd.f32 %v1203, %v1526
      %v1528 = vpop.f32.mrb[0].mxu0
      %v1529 = vadd.f32 %v1207, %v1528
      %v1530 = vpop.f32.mrb[0].mxu0
      %v1531 = vadd.f32 %v1203, %v1530
      %v1532 = vpop.f32.mrb[0].mxu0
      %v1533 = vadd.f32 %v1207, %v1532
      %1534 = vmatprep.mubr.bf16.mxu0 0
      %1535 = vmatmul.mubr.bf16.gmra.mrb[0].mxu0 %v1338
      %v1536 = vpop.f32.mrb[0].mxu0
      %v1537 = vadd.f32 %v1203, %v1536
      %v1538 = vpop.f32.mrb[0].mxu0
      %v1539 = vadd.f32 %v1207, %v1538
      %v1540 = vpop.f32.mrb[0].mxu0
      %v1541 = vadd.f32 %v1203, %v1540
      %v1542 = vpop.f32.mrb[0].mxu0
      %v1543 = vadd.f32 %v1207, %v1542
      %1544 = vmatprep.mubr.bf16.mxu0 0
      %1545 = vmatmul.mubr.bf16.gmra.mrb[0].mxu0 %v1341
      %v1546 = vpop.f32.mrb[0].mxu0
      %v1547 = vadd.f32 %v1203, %v1546
      %v1548 = vpop.f32.mrb[0].mxu0
      %v1549 = vadd.f32 %v1207, %v1548
      %v1550 = vpop.f32.mrb[0].mxu0
      %v1551 = vadd.f32 %v1203, %v1550
      %v1552 = vpop.f32.mrb[0].mxu0
      %v1553 = vadd.f32 %v1207, %v1552
      %1554 = vmatprep.mubr.bf16.mxu0 0
      %1555 = vmatmul.mubr.bf16.gmra.mrb[0].mxu0 %v1344
      %v1556 = vpop.f32.mrb[0].mxu0
      %v1557 = vadd.f32 %v1203, %v1556
      %v1558 = vpop.f32.mrb[0].mxu0
      %v1559 = vadd.f32 %v1207, %v1558
      %v1560 = vpop.f32.mrb[0].mxu0
      %v1561 = vadd.f32 %v1203, %v1560
      %v1562 = vpop.f32.mrb[0].mxu0
      %v1563 = vadd.f32 %v1207, %v1562
      %1564 = vdwg.mxu0
      %1565 = vmatprep.subr.bf16.mxu0 %v1301
      %1566 = vmatpush1.bf16.msra.mxu0 %v1300
      %1567 = vmatprep.subr.bf16.mxu0 %v1311
      %1568 = vmatpush1.bf16.msra.mxu0 %v1310
      %1569 = vmatprep.subr.bf16.mxu0 0
      %1570 = vmatpush1.bf16.msra.mxu0 0
      %1571 = vmatprep.subr.bf16.mxu0 0
      %1572 = vmatpush1.bf16.msra.mxu0 0
      %1573 = vmatprep.subr.bf16.mxu0 0
      %1574 = vmatpush1.bf16.msra.mxu0 0
      %1575 = vmatprep.subr.bf16.mxu0 0
      %1576 = vmatpush1.bf16.msra.mxu0 0
      %1577 = vmatprep.subr.bf16.mxu0 0
      %1578 = vmatpush1.bf16.msra.mxu0 0
      %1579 = vmatprep.subr.bf16.mxu0 0
      %1580 = vmatpush1.bf16.msra.mxu0 0
      %1581 = vmatprep.subr.bf16.mxu0 0
      %1582 = vmatpush1.bf16.msra.mxu0 0
      %1583 = vmatprep.subr.bf16.mxu0 0
      %1584 = vmatpush1.bf16.msra.mxu0 0
      %1585 = vmatprep.subr.bf16.mxu0 0
      %1586 = vmatpush1.bf16.msra.mxu0 0
      %1587 = vmatprep.subr.bf16.mxu0 0
      %1588 = vmatpush1.bf16.msra.mxu0 0
      %1589 = vmatprep.subr.bf16.mxu0 0
      %1590 = vmatpush1.bf16.msra.mxu0 0
      %1591 = vmatprep.subr.bf16.mxu0 0
      %1592 = vmatpush1.bf16.msra.mxu0 0
      %1593 = vmatprep.subr.bf16.mxu0 0
      %1594 = vmatpush1.bf16.msra.mxu0 0
      %1595 = vmatprep.subr.bf16.mxu0 0
      %1596 = vmatpush1.bf16.msra.mxu0 0
      %1597 = vmatprep.mubr.bf16.mxu0 0
      %1598 = vmatmul.mubr.bf16.gmra.mrb[0].mxu0 %v1335
      %v1599 = vpop.f32.mrb[0].mxu0
      %v1600 = vadd.f32 %v1211, %v1599
      %v1601 = vpop.f32.mrb[0].mxu0
      %v1602 = vadd.f32 %v1215, %v1601
      %v1603 = vpop.f32.mrb[0].mxu0
      %v1604 = vadd.f32 %v1211, %v1603
      %v1605 = vpop.f32.mrb[0].mxu0
      %v1606 = vadd.f32 %v1215, %v1605
      %1607 = vmatprep.mubr.bf16.mxu0 0
      %1608 = vmatmul.mubr.bf16.gmra.mrb[0].mxu0 %v1338
      %v1609 = vpop.f32.mrb[0].mxu0
      %v1610 = vadd.f32 %v1211, %v1609
      %v1611 = vpop.f32.mrb[0].mxu0
      %v1612 = vadd.f32 %v1215, %v1611
      %v1613 = vpop.f32.mrb[0].mxu0
      %v1614 = vadd.f32 %v1211, %v1613
      %v1615 = vpop.f32.mrb[0].mxu0
      %v1616 = vadd.f32 %v1215, %v1615
      %1617 = vmatprep.mubr.bf16.mxu0 0
      %1618 = vmatmul.mubr.bf16.gmra.mrb[0].mxu0 %v1341
      %v1619 = vpop.f32.mrb[0].mxu0
      %v1620 = vadd.f32 %v1211, %v1619
      %v1621 = vpop.f32.mrb[0].mxu0
      %v1622 = vadd.f32 %v1215, %v1621
      %v1623 = vpop.f32.mrb[0].mxu0
      %v1624 = vadd.f32 %v1211, %v1623
      %v1625 = vpop.f32.mrb[0].mxu0
      %v1626 = vadd.f32 %v1215, %v1625
      %1627 = vmatprep.mubr.bf16.mxu0 0
      %1628 = vmatmul.mubr.bf16.gmra.mrb[0].mxu0 %v1344
      %v1629 = vpop.f32.mrb[0].mxu0
      %v1630 = vadd.f32 %v1211, %v1629
      %v1631 = vpop.f32.mrb[0].mxu0
      %v1632 = vadd.f32 %v1215, %v1631
      %v1633 = vpop.f32.mrb[0].mxu0
      %v1634 = vadd.f32 %v1211, %v1633
      %v1635 = vpop.f32.mrb[0].mxu0
      %v1636 = vadd.f32 %v1215, %v1635
      %1637 = vdwg.mxu0
      %1638 = vmatprep.subr.bf16.mxu0 %v1303
      %1639 = vmatpush1.bf16.msra.mxu0 %v1302
      %1640 = vmatprep.subr.bf16.mxu0 %v1313
      %1641 = vmatpush1.bf16.msra.mxu0 %v1312
      %1642 = vmatprep.subr.bf16.mxu0 0
      %1643 = vmatpush1.bf16.msra.mxu0 0
      %1644 = vmatprep.subr.bf16.mxu0 0
      %1645 = vmatpush1.bf16.msra.mxu0 0
      %1646 = vmatprep.subr.bf16.mxu0 0
      %1647 = vmatpush1.bf16.msra.mxu0 0
      %1648 = vmatprep.subr.bf16.mxu0 0
      %1649 = vmatpush1.bf16.msra.mxu0 0
      %1650 = vmatprep.subr.bf16.mxu0 0
      %1651 = vmatpush1.bf16.msra.mxu0 0
      %1652 = vmatprep.subr.bf16.mxu0 0
      %1653 = vmatpush1.bf16.msra.mxu0 0
      %1654 = vmatprep.subr.bf16.mxu0 0
      %1655 = vmatpush1.bf16.msra.mxu0 0
      %1656 = vmatprep.subr.bf16.mxu0 0
      %1657 = vmatpush1.bf16.msra.mxu0 0
      %1658 = vmatprep.subr.bf16.mxu0 0
      %1659 = vmatpush1.bf16.msra.mxu0 0
      %1660 = vmatprep.subr.bf16.mxu0 0
      %1661 = vmatpush1.bf16.msra.mxu0 0
      %1662 = vmatprep.subr.bf16.mxu0 0
      %1663 = vmatpush1.bf16.msra.mxu0 0
      %1664 = vmatprep.subr.bf16.mxu0 0
      %1665 = vmatpush1.bf16.msra.mxu0 0
      %1666 = vmatprep.subr.bf16.mxu0 0
      %1667 = vmatpush1.bf16.msra.mxu0 0
      %1668 = vmatprep.subr.bf16.mxu0 0
      %1669 = vmatpush1.bf16.msra.mxu0 0
      %1670 = vmatprep.mubr.bf16.mxu0 0
      %1671 = vmatmul.mubr.bf16.gmra.mrb[0].mxu0 %v1335
      %v1672 = vpop.f32.mrb[0].mxu0
      %v1673 = vadd.f32 %v1219, %v1672
      %v1674 = vpop.f32.mrb[0].mxu0
      %v1675 = vadd.f32 %v1223, %v1674
      %v1676 = vpop.f32.mrb[0].mxu0
      %v1677 = vadd.f32 %v1219, %v1676
      %v1678 = vpop.f32.mrb[0].mxu0
      %v1679 = vadd.f32 %v1223, %v1678
      %1680 = vmatprep.mubr.bf16.mxu0 0
      %1681 = vmatmul.mubr.bf16.gmra.mrb[0].mxu0 %v1338
      %v1682 = vpop.f32.mrb[0].mxu0
      %v1683 = vadd.f32 %v1219, %v1682
      %v1684 = vpop.f32.mrb[0].mxu0
      %v1685 = vadd.f32 %v1223, %v1684
      %v1686 = vpop.f32.mrb[0].mxu0
      %v1687 = vadd.f32 %v1219, %v1686
      %v1688 = vpop.f32.mrb[0].mxu0
      %v1689 = vadd.f32 %v1223, %v1688
      %1690 = vmatprep.mubr.bf16.mxu0 0
      %1691 = vmatmul.mubr.bf16.gmra.mrb[0].mxu0 %v1341
      %v1692 = vpop.f32.mrb[0].mxu0
      %v1693 = vadd.f32 %v1219, %v1692
      %v1694 = vpop.f32.mrb[0].mxu0
      %v1695 = vadd.f32 %v1223, %v1694
      %v1696 = vpop.f32.mrb[0].mxu0
      %v1697 = vadd.f32 %v1219, %v1696
      %v1698 = vpop.f32.mrb[0].mxu0
      %v1699 = vadd.f32 %v1223, %v1698
      %1700 = vmatprep.mubr.bf16.mxu0 0
      %1701 = vmatmul.mubr.bf16.gmra.mrb[0].mxu0 %v1344
      %v1702 = vpop.f32.mrb[0].mxu0
      %v1703 = vadd.f32 %v1219, %v1702
      %v1704 = vpop.f32.mrb[0].mxu0
      %v1705 = vadd.f32 %v1223, %v1704
      %v1706 = vpop.f32.mrb[0].mxu0
      %v1707 = vadd.f32 %v1219, %v1706
      %v1708 = vpop.f32.mrb[0].mxu0
      %v1709 = vadd.f32 %v1223, %v1708
      %1710 = vdwg.mxu0
      %v1711 = vxor.u32 %v1381, 2147483648
      %v1712 = vxor.u32 %v1383, 2147483648
      %v1713 = vxor.u32 %v1454, 2147483648
      %v1714 = vxor.u32 %v1456, 2147483648
      %v1715 = vxor.u32 %v1527, 2147483648
      %v1716 = vxor.u32 %v1529, 2147483648
      %v1717 = vxor.u32 %v1600, 2147483648
      %v1718 = vxor.u32 %v1602, 2147483648
      %v1719 = vxor.u32 %v1673, 2147483648
      %v1720 = vxor.u32 %v1675, 2147483648
      %v1721 = vxor.u32 %v1385, 2147483648
      %v1722 = vxor.u32 %v1387, 2147483648
      %v1723 = vxor.u32 %v1458, 2147483648
      %v1724 = vxor.u32 %v1460, 2147483648
      %v1725 = vxor.u32 %v1531, 2147483648
      %v1726 = vxor.u32 %v1533, 2147483648
      %v1727 = vxor.u32 %v1604, 2147483648
      %v1728 = vxor.u32 %v1606, 2147483648
      %v1729 = vxor.u32 %v1677, 2147483648
      %v1730 = vxor.u32 %v1679, 2147483648
      %v1731 = vxor.u32 %v1391, 2147483648
      %v1732 = vxor.u32 %v1393, 2147483648
      %v1733 = vxor.u32 %v1464, 2147483648
      %v1734 = vxor.u32 %v1466, 2147483648
      %v1735 = vxor.u32 %v1537, 2147483648
      %v1736 = vxor.u32 %v1539, 2147483648
      %v1737 = vxor.u32 %v1610, 2147483648
      %v1738 = vxor.u32 %v1612, 2147483648
      %v1739 = vxor.u32 %v1683, 2147483648
      %v1740 = vxor.u32 %v1685, 2147483648
      %v1741 = vxor.u32 %v1395, 2147483648
      %v1742 = vxor.u32 %v1397, 2147483648
      %v1743 = vxor.u32 %v1468, 2147483648
      %v1744 = vxor.u32 %v1470, 2147483648
      %v1745 = vxor.u32 %v1541, 2147483648
      %v1746 = vxor.u32 %v1543, 2147483648
      %v1747 = vxor.u32 %v1614, 2147483648
      %v1748 = vxor.u32 %v1616, 2147483648
      %v1749 = vxor.u32 %v1687, 2147483648
      %v1750 = vxor.u32 %v1689, 2147483648
      %v1751 = vxor.u32 %v1401, 2147483648
      %v1752 = vxor.u32 %v1403, 2147483648
      %v1753 = vxor.u32 %v1474, 2147483648
      %v1754 = vxor.u32 %v1476, 2147483648
      %v1755 = vxor.u32 %v1547, 2147483648
      %v1756 = vxor.u32 %v1549, 2147483648
      %v1757 = vxor.u32 %v1620, 2147483648
      %v1758 = vxor.u32 %v1622, 2147483648
      %v1759 = vxor.u32 %v1693, 2147483648
      %v1760 = vxor.u32 %v1695, 2147483648
      %v1761 = vxor.u32 %v1405, 2147483648
      %v1762 = vxor.u32 %v1407, 2147483648
      %v1763 = vxor.u32 %v1478, 2147483648
      %v1764 = vxor.u32 %v1480, 2147483648
      %v1765 = vxor.u32 %v1551, 2147483648
      %v1766 = vxor.u32 %v1553, 2147483648
      %v1767 = vxor.u32 %v1624, 2147483648
      %v1768 = vxor.u32 %v1626, 2147483648
      %v1769 = vxor.u32 %v1697, 2147483648
      %v1770 = vxor.u32 %v1699, 2147483648
      %v1771 = vxor.u32 %v1411, 2147483648
      %v1772 = vxor.u32 %v1413, 2147483648
      %v1773 = vxor.u32 %v1484, 2147483648
      %v1774 = vxor.u32 %v1486, 2147483648
      %v1775 = vxor.u32 %v1557, 2147483648
      %v1776 = vxor.u32 %v1559, 2147483648
      %v1777 = vxor.u32 %v1630, 2147483648
      %v1778 = vxor.u32 %v1632, 2147483648
      %v1779 = vxor.u32 %v1703, 2147483648
      %v1780 = vxor.u32 %v1705, 2147483648
      %v1781 = vxor.u32 %v1415, 2147483648
      %v1782 = vxor.u32 %v1417, 2147483648
      %v1783 = vxor.u32 %v1488, 2147483648
      %v1784 = vxor.u32 %v1490, 2147483648
      %v1785 = vxor.u32 %v1561, 2147483648
      %v1786 = vxor.u32 %v1563, 2147483648
      %v1787 = vxor.u32 %v1634, 2147483648
      %v1788 = vxor.u32 %v1636, 2147483648
      %v1789 = vxor.u32 %v1707, 2147483648
      %v1790 = vxor.u32 %v1709, 2147483648
      %v1791 = vmul.f32 %v1711, 1.442695
      %v1792 = vpow.pop %v1791
      %v1793 = vmul.f32 %v1712, 1.442695
      %v1794 = vpow.pop %v1793
      %v1795 = vmul.f32 %v1713, 1.442695
      %v1796 = vpow.pop %v1795
      %v1797 = vmul.f32 %v1714, 1.442695
      %v1798 = vpow.pop %v1797
      %v1799 = vmul.f32 %v1715, 1.442695
      %v1800 = vpow.pop %v1799
      %v1801 = vmul.f32 %v1716, 1.442695
      %v1802 = vpow.pop %v1801
      %v1803 = vmul.f32 %v1717, 1.442695
      %v1804 = vpow.pop %v1803
      %v1805 = vmul.f32 %v1718, 1.442695
      %v1806 = vpow.pop %v1805
      %v1807 = vmul.f32 %v1719, 1.442695
      %v1808 = vpow.pop %v1807
      %v1809 = vmul.f32 %v1720, 1.442695
      %v1810 = vpow.pop %v1809
      %v1811 = vmul.f32 %v1721, 1.442695
      %v1812 = vpow.pop %v1811
      %v1813 = vmul.f32 %v1722, 1.442695
      %v1814 = vpow.pop %v1813
      %v1815 = vmul.f32 %v1723, 1.442695
      %v1816 = vpow.pop %v1815
      %v1817 = vmul.f32 %v1724, 1.442695
      %v1818 = vpow.pop %v1817
      %v1819 = vmul.f32 %v1725, 1.442695
      %v1820 = vpow.pop %v1819
      %v1821 = vmul.f32 %v1726, 1.442695
      %v1822 = vpow.pop %v1821
      %v1823 = vmul.f32 %v1727, 1.442695
      %v1824 = vpow.pop %v1823
      %v1825 = vmul.f32 %v1728, 1.442695
      %v1826 = vpow.pop %v1825
      %v1827 = vmul.f32 %v1729, 1.442695
      %v1828 = vpow.pop %v1827
      %v1829 = vmul.f32 %v1730, 1.442695
      %v1830 = vpow.pop %v1829
      %v1831 = vmul.f32 %v1731, 1.442695
      %v1832 = vpow.pop %v1831
      %v1833 = vmul.f32 %v1732, 1.442695
      %v1834 = vpow.pop %v1833
      %v1835 = vmul.f32 %v1733, 1.442695
      %v1836 = vpow.pop %v1835
      %v1837 = vmul.f32 %v1734, 1.442695
      %v1838 = vpow.pop %v1837
      %v1839 = vmul.f32 %v1735, 1.442695
      %v1840 = vpow.pop %v1839
      %v1841 = vmul.f32 %v1736, 1.442695
      %v1842 = vpow.pop %v1841
      %v1843 = vmul.f32 %v1737, 1.442695
      %v1844 = vpow.pop %v1843
      %v1845 = vmul.f32 %v1738, 1.442695
      %v1846 = vpow.pop %v1845
      %v1847 = vmul.f32 %v1739, 1.442695
      %v1848 = vpow.pop %v1847
      %v1849 = vmul.f32 %v1740, 1.442695
      %v1850 = vpow.pop %v1849
      %v1851 = vmul.f32 %v1741, 1.442695
      %v1852 = vpow.pop %v1851
      %v1853 = vmul.f32 %v1742, 1.442695
      %v1854 = vpow.pop %v1853
      %v1855 = vmul.f32 %v1743, 1.442695
      %v1856 = vpow.pop %v1855
      %v1857 = vmul.f32 %v1744, 1.442695
      %v1858 = vpow.pop %v1857
      %v1859 = vmul.f32 %v1745, 1.442695
      %v1860 = vpow.pop %v1859
      %v1861 = vmul.f32 %v1746, 1.442695
      %v1862 = vpow.pop %v1861
      %v1863 = vmul.f32 %v1747, 1.442695
      %v1864 = vpow.pop %v1863
      %v1865 = vmul.f32 %v1748, 1.442695
      %v1866 = vpow.pop %v1865
      %v1867 = vmul.f32 %v1749, 1.442695
      %v1868 = vpow.pop %v1867
      %v1869 = vmul.f32 %v1750, 1.442695
      %v1870 = vpow.pop %v1869
      %v1871 = vmul.f32 %v1751, 1.442695
      %v1872 = vpow.pop %v1871
      %v1873 = vmul.f32 %v1752, 1.442695
      %v1874 = vpow.pop %v1873
      %v1875 = vmul.f32 %v1753, 1.442695
      %v1876 = vpow.pop %v1875
      %v1877 = vmul.f32 %v1754, 1.442695
      %v1878 = vpow.pop %v1877
      %v1879 = vmul.f32 %v1755, 1.442695
      %v1880 = vpow.pop %v1879
      %v1881 = vmul.f32 %v1756, 1.442695
      %v1882 = vpow.pop %v1881
      %v1883 = vmul.f32 %v1757, 1.442695
      %v1884 = vpow.pop %v1883
      %v1885 = vmul.f32 %v1758, 1.442695
      %v1886 = vpow.pop %v1885
      %v1887 = vmul.f32 %v1759, 1.442695
      %v1888 = vpow.pop %v1887
      %v1889 = vmul.f32 %v1760, 1.442695
      %v1890 = vpow.pop %v1889
      %v1891 = vmul.f32 %v1761, 1.442695
      %v1892 = vpow.pop %v1891
      %v1893 = vmul.f32 %v1762, 1.442695
      %v1894 = vpow.pop %v1893
      %v1895 = vmul.f32 %v1763, 1.442695
      %v1896 = vpow.pop %v1895
      %v1897 = vmul.f32 %v1764, 1.442695
      %v1898 = vpow.pop %v1897
      %v1899 = vmul.f32 %v1765, 1.442695
      %v1900 = vpow.pop %v1899
      %v1901 = vmul.f32 %v1766, 1.442695
      %v1902 = vpow.pop %v1901
      %v1903 = vmul.f32 %v1767, 1.442695
      %v1904 = vpow.pop %v1903
      %v1905 = vmul.f32 %v1768, 1.442695
      %v1906 = vpow.pop %v1905
      %v1907 = vmul.f32 %v1769, 1.442695
      %v1908 = vpow.pop %v1907
      %v1909 = vmul.f32 %v1770, 1.442695
      %v1910 = vpow.pop %v1909
      %v1911 = vmul.f32 %v1771, 1.442695
      %v1912 = vpow.pop %v1911
      %v1913 = vmul.f32 %v1772, 1.442695
      %v1914 = vpow.pop %v1913
      %v1915 = vmul.f32 %v1773, 1.442695
      %v1916 = vpow.pop %v1915
      %v1917 = vmul.f32 %v1774, 1.442695
      %v1918 = vpow.pop %v1917
      %v1919 = vmul.f32 %v1775, 1.442695
      %v1920 = vpow.pop %v1919
      %v1921 = vmul.f32 %v1776, 1.442695
      %v1922 = vpow.pop %v1921
      %v1923 = vmul.f32 %v1777, 1.442695
      %v1924 = vpow.pop %v1923
      %v1925 = vmul.f32 %v1778, 1.442695
      %v1926 = vpow.pop %v1925
      %v1927 = vmul.f32 %v1779, 1.442695
      %v1928 = vpow.pop %v1927
      %v1929 = vmul.f32 %v1780, 1.442695
      %v1930 = vpow.pop %v1929
      %v1931 = vmul.f32 %v1781, 1.442695
      %v1932 = vpow.pop %v1931
      %v1933 = vmul.f32 %v1782, 1.442695
      %v1934 = vpow.pop %v1933
      %v1935 = vmul.f32 %v1783, 1.442695
      %v1936 = vpow.pop %v1935
      %v1937 = vmul.f32 %v1784, 1.442695
      %v1938 = vpow.pop %v1937
      %v1939 = vmul.f32 %v1785, 1.442695
      %v1940 = vpow.pop %v1939
      %v1941 = vmul.f32 %v1786, 1.442695
      %v1942 = vpow.pop %v1941
      %v1943 = vmul.f32 %v1787, 1.442695
      %v1944 = vpow.pop %v1943
      %v1945 = vmul.f32 %v1788, 1.442695
      %v1946 = vpow.pop %v1945
      %v1947 = vmul.f32 %v1789, 1.442695
      %v1948 = vpow.pop %v1947
      %v1949 = vmul.f32 %v1790, 1.442695
      %v1950 = vpow.pop %v1949
      %v1951 = vadd.f32 %v1792, 1.0
      %v1952 = vadd.f32 %v1794, 1.0
      %v1953 = vadd.f32 %v1796, 1.0
      %v1954 = vadd.f32 %v1798, 1.0
      %v1955 = vadd.f32 %v1800, 1.0
      %v1956 = vadd.f32 %v1802, 1.0
      %v1957 = vadd.f32 %v1804, 1.0
      %v1958 = vadd.f32 %v1806, 1.0
      %v1959 = vadd.f32 %v1808, 1.0
      %v1960 = vadd.f32 %v1810, 1.0
      %v1961 = vadd.f32 %v1812, 1.0
      %v1962 = vadd.f32 %v1814, 1.0
      %v1963 = vadd.f32 %v1816, 1.0
      %v1964 = vadd.f32 %v1818, 1.0
      %v1965 = vadd.f32 %v1820, 1.0
      %v1966 = vadd.f32 %v1822, 1.0
      %v1967 = vadd.f32 %v1824, 1.0
      %v1968 = vadd.f32 %v1826, 1.0
      %v1969 = vadd.f32 %v1828, 1.0
      %v1970 = vadd.f32 %v1830, 1.0
      %v1971 = vadd.f32 %v1832, 1.0
      %v1972 = vadd.f32 %v1834, 1.0
      %v1973 = vadd.f32 %v1836, 1.0
      %v1974 = vadd.f32 %v1838, 1.0
      %v1975 = vadd.f32 %v1840, 1.0
      %v1976 = vadd.f32 %v1842, 1.0
      %v1977 = vadd.f32 %v1844, 1.0
      %v1978 = vadd.f32 %v1846, 1.0
      %v1979 = vadd.f32 %v1848, 1.0
      %v1980 = vadd.f32 %v1850, 1.0
      %v1981 = vadd.f32 %v1852, 1.0
      %v1982 = vadd.f32 %v1854, 1.0
      %v1983 = vadd.f32 %v1856, 1.0
      %v1984 = vadd.f32 %v1858, 1.0
      %v1985 = vadd.f32 %v1860, 1.0
      %v1986 = vadd.f32 %v1862, 1.0
      %v1987 = vadd.f32 %v1864, 1.0
      %v1988 = vadd.f32 %v1866, 1.0
      %v1989 = vadd.f32 %v1868, 1.0
      %v1990 = vadd.f32 %v1870, 1.0
      %v1991 = vadd.f32 %v1872, 1.0
      %v1992 = vadd.f32 %v1874, 1.0
      %v1993 = vadd.f32 %v1876, 1.0
      %v1994 = vadd.f32 %v1878, 1.0
      %v1995 = vadd.f32 %v1880, 1.0
      %v1996 = vadd.f32 %v1882, 1.0
      %v1997 = vadd.f32 %v1884, 1.0
      %v1998 = vadd.f32 %v1886, 1.0
      %v1999 = vadd.f32 %v1888, 1.0
      %v2000 = vadd.f32 %v1890, 1.0
      %v2001 = vadd.f32 %v1892, 1.0
      %v2002 = vadd.f32 %v1894, 1.0
      %v2003 = vadd.f32 %v1896, 1.0
      %v2004 = vadd.f32 %v1898, 1.0
      %v2005 = vadd.f32 %v1900, 1.0
      %v2006 = vadd.f32 %v1902, 1.0
      %v2007 = vadd.f32 %v1904, 1.0
      %v2008 = vadd.f32 %v1906, 1.0
      %v2009 = vadd.f32 %v1908, 1.0
      %v2010 = vadd.f32 %v1910, 1.0
      %v2011 = vadd.f32 %v1912, 1.0
      %v2012 = vadd.f32 %v1914, 1.0
      %v2013 = vadd.f32 %v1916, 1.0
      %v2014 = vadd.f32 %v1918, 1.0
      %v2015 = vadd.f32 %v1920, 1.0
      %v2016 = vadd.f32 %v1922, 1.0
      %v2017 = vadd.f32 %v1924, 1.0
      %v2018 = vadd.f32 %v1926, 1.0
      %v2019 = vadd.f32 %v1928, 1.0
      %v2020 = vadd.f32 %v1930, 1.0
      %v2021 = vadd.f32 %v1932, 1.0
      %v2022 = vadd.f32 %v1934, 1.0
      %v2023 = vadd.f32 %v1936, 1.0
      %v2024 = vadd.f32 %v1938, 1.0
      %v2025 = vadd.f32 %v1940, 1.0
      %v2026 = vadd.f32 %v1942, 1.0
      %v2027 = vadd.f32 %v1944, 1.0
      %v2028 = vadd.f32 %v1946, 1.0
      %v2029 = vadd.f32 %v1948, 1.0
      %v2030 = vadd.f32 %v1950, 1.0
      %v2031 = vrcp.pop %v1951
      %v2032 = vmul.f32 1.0, %v2031
      %v2033 = vrcp.pop %v1952
      %v2034 = vmul.f32 1.0, %v2033
      %v2035 = vrcp.pop %v1953
      %v2036 = vmul.f32 1.0, %v2035
      %v2037 = vrcp.pop %v1954
      %v2038 = vmul.f32 1.0, %v2037
      %v2039 = vrcp.pop %v1955
      %v2040 = vmul.f32 1.0, %v2039
      %v2041 = vrcp.pop %v1956
      %v2042 = vmul.f32 1.0, %v2041
      %v2043 = vrcp.pop %v1957
      %v2044 = vmul.f32 1.0, %v2043
      %v2045 = vrcp.pop %v1958
      %v2046 = vmul.f32 1.0, %v2045
      %v2047 = vrcp.pop %v1959
      %v2048 = vmul.f32 1.0, %v2047
      %v2049 = vrcp.pop %v1960
      %v2050 = vmul.f32 1.0, %v2049
      %v2051 = vrcp.pop %v1961
      %v2052 = vmul.f32 1.0, %v2051
      %v2053 = vrcp.pop %v1962
      %v2054 = vmul.f32 1.0, %v2053
      %v2055 = vrcp.pop %v1963
      %v2056 = vmul.f32 1.0, %v2055
      %v2057 = vrcp.pop %v1964
      %v2058 = vmul.f32 1.0, %v2057
      %v2059 = vrcp.pop %v1965
      %v2060 = vmul.f32 1.0, %v2059
      %v2061 = vrcp.pop %v1966
      %v2062 = vmul.f32 1.0, %v2061
      %v2063 = vrcp.pop %v1967
      %v2064 = vmul.f32 1.0, %v2063
      %v2065 = vrcp.pop %v1968
      %v2066 = vmul.f32 1.0, %v2065
      %v2067 = vrcp.pop %v1969
      %v2068 = vmul.f32 1.0, %v2067
      %v2069 = vrcp.pop %v1970
      %v2070 = vmul.f32 1.0, %v2069
      %v2071 = vrcp.pop %v1971
      %v2072 = vmul.f32 1.0, %v2071
      %v2073 = vrcp.pop %v1972
      %v2074 = vmul.f32 1.0, %v2073
      %v2075 = vrcp.pop %v1973
      %v2076 = vmul.f32 1.0, %v2075
      %v2077 = vrcp.pop %v1974
      %v2078 = vmul.f32 1.0, %v2077
      %v2079 = vrcp.pop %v1975
      %v2080 = vmul.f32 1.0, %v2079
      %v2081 = vrcp.pop %v1976
      %v2082 = vmul.f32 1.0, %v2081
      %v2083 = vrcp.pop %v1977
      %v2084 = vmul.f32 1.0, %v2083
      %v2085 = vrcp.pop %v1978
      %v2086 = vmul.f32 1.0, %v2085
      %v2087 = vrcp.pop %v1979
      %v2088 = vmul.f32 1.0, %v2087
      %v2089 = vrcp.pop %v1980
      %v2090 = vmul.f32 1.0, %v2089
      %v2091 = vrcp.pop %v1981
      %v2092 = vmul.f32 1.0, %v2091
      %v2093 = vrcp.pop %v1982
      %v2094 = vmul.f32 1.0, %v2093
      %v2095 = vrcp.pop %v1983
      %v2096 = vmul.f32 1.0, %v2095
      %v2097 = vrcp.pop %v1984
      %v2098 = vmul.f32 1.0, %v2097
      %v2099 = vrcp.pop %v1985
      %v2100 = vmul.f32 1.0, %v2099
      %v2101 = vrcp.pop %v1986
      %v2102 = vmul.f32 1.0, %v2101
      %v2103 = vrcp.pop %v1987
      %v2104 = vmul.f32 1.0, %v2103
      %v2105 = vrcp.pop %v1988
      %v2106 = vmul.f32 1.0, %v2105
      %v2107 = vrcp.pop %v1989
      %v2108 = vmul.f32 1.0, %v2107
      %v2109 = vrcp.pop %v1990
      %v2110 = vmul.f32 1.0, %v2109
      %v2111 = vrcp.pop %v1991
      %v2112 = vmul.f32 1.0, %v2111
      %v2113 = vrcp.pop %v1992
      %v2114 = vmul.f32 1.0, %v2113
      %v2115 = vrcp.pop %v1993
      %v2116 = vmul.f32 1.0, %v2115
      %v2117 = vrcp.pop %v1994
      %v2118 = vmul.f32 1.0, %v2117
      %v2119 = vrcp.pop %v1995
      %v2120 = vmul.f32 1.0, %v2119
      %v2121 = vrcp.pop %v1996
      %v2122 = vmul.f32 1.0, %v2121
      %v2123 = vrcp.pop %v1997
      %v2124 = vmul.f32 1.0, %v2123
      %v2125 = vrcp.pop %v1998
      %v2126 = vmul.f32 1.0, %v2125
      %v2127 = vrcp.pop %v1999
      %v2128 = vmul.f32 1.0, %v2127
      %v2129 = vrcp.pop %v2000
      %v2130 = vmul.f32 1.0, %v2129
      %v2131 = vrcp.pop %v2001
      %v2132 = vmul.f32 1.0, %v2131
      %v2133 = vrcp.pop %v2002
      %v2134 = vmul.f32 1.0, %v2133
      %v2135 = vrcp.pop %v2003
      %v2136 = vmul.f32 1.0, %v2135
      %v2137 = vrcp.pop %v2004
      %v2138 = vmul.f32 1.0, %v2137
      %v2139 = vrcp.pop %v2005
      %v2140 = vmul.f32 1.0, %v2139
      %v2141 = vrcp.pop %v2006
      %v2142 = vmul.f32 1.0, %v2141
      %v2143 = vrcp.pop %v2007
      %v2144 = vmul.f32 1.0, %v2143
      %v2145 = vrcp.pop %v2008
      %v2146 = vmul.f32 1.0, %v2145
      %v2147 = vrcp.pop %v2009
      %v2148 = vmul.f32 1.0, %v2147
      %v2149 = vrcp.pop %v2010
      %v2150 = vmul.f32 1.0, %v2149
      %v2151 = vrcp.pop %v2011
      %v2152 = vmul.f32 1.0, %v2151
      %v2153 = vrcp.pop %v2012
      %v2154 = vmul.f32 1.0, %v2153
      %v2155 = vrcp.pop %v2013
      %v2156 = vmul.f32 1.0, %v2155
      %v2157 = vrcp.pop %v2014
      %v2158 = vmul.f32 1.0, %v2157
      %v2159 = vrcp.pop %v2015
      %v2160 = vmul.f32 1.0, %v2159
      %v2161 = vrcp.pop %v2016
      %v2162 = vmul.f32 1.0, %v2161
      %v2163 = vrcp.pop %v2017
      %v2164 = vmul.f32 1.0, %v2163
      %v2165 = vrcp.pop %v2018
      %v2166 = vmul.f32 1.0, %v2165
      %v2167 = vrcp.pop %v2019
      %v2168 = vmul.f32 1.0, %v2167
      %v2169 = vrcp.pop %v2020
      %v2170 = vmul.f32 1.0, %v2169
      %v2171 = vrcp.pop %v2021
      %v2172 = vmul.f32 1.0, %v2171
      %v2173 = vrcp.pop %v2022
      %v2174 = vmul.f32 1.0, %v2173
      %v2175 = vrcp.pop %v2023
      %v2176 = vmul.f32 1.0, %v2175
      %v2177 = vrcp.pop %v2024
      %v2178 = vmul.f32 1.0, %v2177
      %v2179 = vrcp.pop %v2025
      %v2180 = vmul.f32 1.0, %v2179
      %v2181 = vrcp.pop %v2026
      %v2182 = vmul.f32 1.0, %v2181
      %v2183 = vrcp.pop %v2027
      %v2184 = vmul.f32 1.0, %v2183
      %v2185 = vrcp.pop %v2028
      %v2186 = vmul.f32 1.0, %v2185
      %v2187 = vrcp.pop %v2029
      %v2188 = vmul.f32 1.0, %v2187
      %v2189 = vrcp.pop %v2030
      %v2190 = vmul.f32 1.0, %v2189
      %v2191 = vmul.f32 %v1381, %v2032
      %v2192 = vmul.f32 %v1383, %v2034
      %v2193 = vmul.f32 %v1454, %v2036
      %v2194 = vmul.f32 %v1456, %v2038
      %v2195 = vmul.f32 %v1527, %v2040
      %v2196 = vmul.f32 %v1529, %v2042
      %v2197 = vmul.f32 %v1600, %v2044
      %v2198 = vmul.f32 %v1602, %v2046
      %v2199 = vmul.f32 %v1673, %v2048
      %v2200 = vmul.f32 %v1675, %v2050
      %v2201 = vmul.f32 %v1385, %v2052
      %v2202 = vmul.f32 %v1387, %v2054
      %v2203 = vmul.f32 %v1458, %v2056
      %v2204 = vmul.f32 %v1460, %v2058
      %v2205 = vmul.f32 %v1531, %v2060
      %v2206 = vmul.f32 %v1533, %v2062
      %v2207 = vmul.f32 %v1604, %v2064
      %v2208 = vmul.f32 %v1606, %v2066
      %v2209 = vmul.f32 %v1677, %v2068
      %v2210 = vmul.f32 %v1679, %v2070
      %v2211 = vmul.f32 %v1391, %v2072
      %v2212 = vmul.f32 %v1393, %v2074
      %v2213 = vmul.f32 %v1464, %v2076
      %v2214 = vmul.f32 %v1466, %v2078
      %v2215 = vmul.f32 %v1537, %v2080
      %v2216 = vmul.f32 %v1539, %v2082
      %v2217 = vmul.f32 %v1610, %v2084
      %v2218 = vmul.f32 %v1612, %v2086
      %v2219 = vmul.f32 %v1683, %v2088
      %v2220 = vmul.f32 %v1685, %v2090
      %v2221 = vmul.f32 %v1395, %v2092
      %v2222 = vmul.f32 %v1397, %v2094
      %v2223 = vmul.f32 %v1468, %v2096
      %v2224 = vmul.f32 %v1470, %v2098
      %v2225 = vmul.f32 %v1541, %v2100
      %v2226 = vmul.f32 %v1543, %v2102
      %v2227 = vmul.f32 %v1614, %v2104
      %v2228 = vmul.f32 %v1616, %v2106
      %v2229 = vmul.f32 %v1687, %v2108
      %v2230 = vmul.f32 %v1689, %v2110
      %v2231 = vmul.f32 %v1401, %v2112
      %v2232 = vmul.f32 %v1403, %v2114
      %v2233 = vmul.f32 %v1474, %v2116
      %v2234 = vmul.f32 %v1476, %v2118
      %v2235 = vmul.f32 %v1547, %v2120
      %v2236 = vmul.f32 %v1549, %v2122
      %v2237 = vmul.f32 %v1620, %v2124
      %v2238 = vmul.f32 %v1622, %v2126
      %v2239 = vmul.f32 %v1693, %v2128
      %v2240 = vmul.f32 %v1695, %v2130
      %v2241 = vmul.f32 %v1405, %v2132
      %v2242 = vmul.f32 %v1407, %v2134
      %v2243 = vmul.f32 %v1478, %v2136
      %v2244 = vmul.f32 %v1480, %v2138
      %v2245 = vmul.f32 %v1551, %v2140
      %v2246 = vmul.f32 %v1553, %v2142
      %v2247 = vmul.f32 %v1624, %v2144
      %v2248 = vmul.f32 %v1626, %v2146
      %v2249 = vmul.f32 %v1697, %v2148
      %v2250 = vmul.f32 %v1699, %v2150
      %v2251 = vmul.f32 %v1411, %v2152
      %v2252 = vmul.f32 %v1413, %v2154
      %v2253 = vmul.f32 %v1484, %v2156
      %v2254 = vmul.f32 %v1486, %v2158
      %v2255 = vmul.f32 %v1557, %v2160
      %v2256 = vmul.f32 %v1559, %v2162
      %v2257 = vmul.f32 %v1630, %v2164
      %v2258 = vmul.f32 %v1632, %v2166
      %v2259 = vmul.f32 %v1703, %v2168
      %v2260 = vmul.f32 %v1705, %v2170
      %v2261 = vmul.f32 %v1415, %v2172
      %v2262 = vmul.f32 %v1417, %v2174
      %v2263 = vmul.f32 %v1488, %v2176
      %v2264 = vmul.f32 %v1490, %v2178
      %v2265 = vmul.f32 %v1561, %v2180
      %v2266 = vmul.f32 %v1563, %v2182
      %v2267 = vmul.f32 %v1634, %v2184
      %v2268 = vmul.f32 %v1636, %v2186
      %v2269 = vmul.f32 %v1707, %v2188
      %v2270 = vmul.f32 %v1709, %v2190
      %vm2271 = vcmask 523264
      %v2273 = vsel %vm2271, 0.015625, 0
      %2275 = vmatprep.subr.mxu0 %v2192
      %2276 = vmatpush1.msra.mxu0 %v2191
      %2277 = vmatprep.subr.mxu0 %v2202
      %2278 = vmatpush1.msra.mxu0 %v2201
      %2279 = vmatprep.subr.mxu0 %v2212
      %2280 = vmatpush1.msra.mxu0 %v2211
      %2281 = vmatprep.subr.mxu0 %v2222
      %2282 = vmatpush1.msra.mxu0 %v2221
      %2283 = vmatprep.subr.mxu0 %v2232
      %2284 = vmatpush1.msra.mxu0 %v2231
      %2285 = vmatprep.subr.mxu0 %v2242
      %2286 = vmatpush1.msra.mxu0 %v2241
      %2287 = vmatprep.subr.mxu0 %v2252
      %2288 = vmatpush1.msra.mxu0 %v2251
      %2289 = vmatprep.subr.mxu0 %v2262
      %2290 = vmatpush1.msra.mxu0 %v2261
      %2291 = vmatprep.subr.mxu0 0.0
      %2292 = vmatpush1.msra.mxu0 0.0
      %2293 = vmatprep.subr.mxu0 0.0
      %2294 = vmatpush1.msra.mxu0 0.0
      %2295 = vmatprep.subr.mxu0 0.0
      %2296 = vmatpush1.msra.mxu0 0.0
      %2297 = vmatprep.subr.mxu0 0.0
      %2298 = vmatpush1.msra.mxu0 0.0
      %2299 = vmatprep.subr.mxu0 0.0
      %2300 = vmatpush1.msra.mxu0 0.0
      %2301 = vmatprep.subr.mxu0 0.0
      %2302 = vmatpush1.msra.mxu0 0.0
      %2303 = vmatprep.subr.mxu0 0.0
      %2304 = vmatpush1.msra.mxu0 0.0
      %2305 = vmatprep.subr.mxu0 0.0
      %2306 = vmatpush1.msra.mxu0 0.0
      %2307 = vmatprep.subr.mxu0 0.0
      %2308 = vmatpush1.msra.mxu0 0.0
      %2309 = vmatprep.subr.mxu0 0.0
      %2310 = vmatpush1.msra.mxu0 0.0
      %2311 = vmatprep.subr.mxu0 0.0
      %2312 = vmatpush1.msra.mxu0 0.0
      %2313 = vmatprep.subr.mxu0 0.0
      %2314 = vmatpush1.msra.mxu0 0.0
      %2315 = vmatprep.subr.mxu0 0.0
      %2316 = vmatpush1.msra.mxu0 0.0
      %2317 = vmatprep.subr.mxu0 0.0
      %2318 = vmatpush1.msra.mxu0 0.0
      %2319 = vmatprep.subr.mxu0 0.0
      %2320 = vmatpush1.msra.mxu0 0.0
      %2321 = vmatprep.subr.mxu0 0.0
      %2322 = vmatpush1.msra.mxu0 0.0
      %2323 = vmatprep.subr.mxu0 0.0
      %2324 = vmatpush1.msra.mxu0 0.0
      %2325 = vmatprep.subr.mxu0 0.0
      %2326 = vmatpush1.msra.mxu0 0.0
      %2327 = vmatprep.subr.mxu0 0.0
      %2328 = vmatpush1.msra.mxu0 0.0
      %2329 = vmatprep.subr.mxu0 0.0
      %2330 = vmatpush1.msra.mxu0 0.0
      %2331 = vmatprep.subr.mxu0 0.0
      %2332 = vmatpush1.msra.mxu0 0.0
      %2333 = vmatprep.subr.mxu0 0.0
      %2334 = vmatpush1.msra.mxu0 0.0
      %2335 = vmatprep.subr.mxu0 0.0
      %2336 = vmatpush1.msra.mxu0 0.0
      %2337 = vmatprep.subr.mxu0 0.0
      %2338 = vmatpush1.msra.mxu0 0.0
      %2339 = vmatprep.mubr.f32.mxu0 0.0
      %2340 = vmatmul.mubr.f32.gmra.mrb[0].mxu0 %v2273
      %v2341 = vpop.f32.mrb[0].mxu0
      %v2342 = vadd.f32 0.0, %v2341
      %v2343 = vpop.f32.mrb[0].mxu0
      %v2344 = vadd.f32 0.0, %v2343
      %2345 = vdwg.mxu0
      %2346 = vmatprep.subr.mxu0 %v2194
      %2347 = vmatpush1.msra.mxu0 %v2193
      %2348 = vmatprep.subr.mxu0 %v2204
      %2349 = vmatpush1.msra.mxu0 %v2203
      %2350 = vmatprep.subr.mxu0 %v2214
      %2351 = vmatpush1.msra.mxu0 %v2213
      %2352 = vmatprep.subr.mxu0 %v2224
      %2353 = vmatpush1.msra.mxu0 %v2223
      %2354 = vmatprep.subr.mxu0 %v2234
      %2355 = vmatpush1.msra.mxu0 %v2233
      %2356 = vmatprep.subr.mxu0 %v2244
      %2357 = vmatpush1.msra.mxu0 %v2243
      %2358 = vmatprep.subr.mxu0 %v2254
      %2359 = vmatpush1.msra.mxu0 %v2253
      %2360 = vmatprep.subr.mxu0 %v2264
      %2361 = vmatpush1.msra.mxu0 %v2263
      %2362 = vmatprep.subr.mxu0 0.0
      %2363 = vmatpush1.msra.mxu0 0.0
      %2364 = vmatprep.subr.mxu0 0.0
      %2365 = vmatpush1.msra.mxu0 0.0
      %2366 = vmatprep.subr.mxu0 0.0
      %2367 = vmatpush1.msra.mxu0 0.0
      %2368 = vmatprep.subr.mxu0 0.0
      %2369 = vmatpush1.msra.mxu0 0.0
      %2370 = vmatprep.subr.mxu0 0.0
      %2371 = vmatpush1.msra.mxu0 0.0
      %2372 = vmatprep.subr.mxu0 0.0
      %2373 = vmatpush1.msra.mxu0 0.0
      %2374 = vmatprep.subr.mxu0 0.0
      %2375 = vmatpush1.msra.mxu0 0.0
      %2376 = vmatprep.subr.mxu0 0.0
      %2377 = vmatpush1.msra.mxu0 0.0
      %2378 = vmatprep.subr.mxu0 0.0
      %2379 = vmatpush1.msra.mxu0 0.0
      %2380 = vmatprep.subr.mxu0 0.0
      %2381 = vmatpush1.msra.mxu0 0.0
      %2382 = vmatprep.subr.mxu0 0.0
      %2383 = vmatpush1.msra.mxu0 0.0
      %2384 = vmatprep.subr.mxu0 0.0
      %2385 = vmatpush1.msra.mxu0 0.0
      %2386 = vmatprep.subr.mxu0 0.0
      %2387 = vmatpush1.msra.mxu0 0.0
      %2388 = vmatprep.subr.mxu0 0.0
      %2389 = vmatpush1.msra.mxu0 0.0
      %2390 = vmatprep.subr.mxu0 0.0
      %2391 = vmatpush1.msra.mxu0 0.0
      %2392 = vmatprep.subr.mxu0 0.0
      %2393 = vmatpush1.msra.mxu0 0.0
      %2394 = vmatprep.subr.mxu0 0.0
      %2395 = vmatpush1.msra.mxu0 0.0
      %2396 = vmatprep.subr.mxu0 0.0
      %2397 = vmatpush1.msra.mxu0 0.0
      %2398 = vmatprep.subr.mxu0 0.0
      %2399 = vmatpush1.msra.mxu0 0.0
      %2400 = vmatprep.subr.mxu0 0.0
      %2401 = vmatpush1.msra.mxu0 0.0
      %2402 = vmatprep.subr.mxu0 0.0
      %2403 = vmatpush1.msra.mxu0 0.0
      %2404 = vmatprep.subr.mxu0 0.0
      %2405 = vmatpush1.msra.mxu0 0.0
      %2406 = vmatprep.subr.mxu0 0.0
      %2407 = vmatpush1.msra.mxu0 0.0
      %2408 = vmatprep.subr.mxu0 0.0
      %2409 = vmatpush1.msra.mxu0 0.0
      %2410 = vmatprep.mubr.f32.mxu0 0.0
      %2411 = vmatmul.mubr.f32.gmra.mrb[0].mxu0 %v2273
      %v2412 = vpop.f32.mrb[0].mxu0
      %v2413 = vadd.f32 0.0, %v2412
      %v2414 = vpop.f32.mrb[0].mxu0
      %v2415 = vadd.f32 0.0, %v2414
      %2416 = vdwg.mxu0
      %2417 = vmatprep.subr.mxu0 %v2196
      %2418 = vmatpush1.msra.mxu0 %v2195
      %2419 = vmatprep.subr.mxu0 %v2206
      %2420 = vmatpush1.msra.mxu0 %v2205
      %2421 = vmatprep.subr.mxu0 %v2216
      %2422 = vmatpush1.msra.mxu0 %v2215
      %2423 = vmatprep.subr.mxu0 %v2226
      %2424 = vmatpush1.msra.mxu0 %v2225
      %2425 = vmatprep.subr.mxu0 %v2236
      %2426 = vmatpush1.msra.mxu0 %v2235
      %2427 = vmatprep.subr.mxu0 %v2246
      %2428 = vmatpush1.msra.mxu0 %v2245
      %2429 = vmatprep.subr.mxu0 %v2256
      %2430 = vmatpush1.msra.mxu0 %v2255
      %2431 = vmatprep.subr.mxu0 %v2266
      %2432 = vmatpush1.msra.mxu0 %v2265
      %2433 = vmatprep.subr.mxu0 0.0
      %2434 = vmatpush1.msra.mxu0 0.0
      %2435 = vmatprep.subr.mxu0 0.0
      %2436 = vmatpush1.msra.mxu0 0.0
      %2437 = vmatprep.subr.mxu0 0.0
      %2438 = vmatpush1.msra.mxu0 0.0
      %2439 = vmatprep.subr.mxu0 0.0
      %2440 = vmatpush1.msra.mxu0 0.0
      %2441 = vmatprep.subr.mxu0 0.0
      %2442 = vmatpush1.msra.mxu0 0.0
      %2443 = vmatprep.subr.mxu0 0.0
      %2444 = vmatpush1.msra.mxu0 0.0
      %2445 = vmatprep.subr.mxu0 0.0
      %2446 = vmatpush1.msra.mxu0 0.0
      %2447 = vmatprep.subr.mxu0 0.0
      %2448 = vmatpush1.msra.mxu0 0.0
      %2449 = vmatprep.subr.mxu0 0.0
      %2450 = vmatpush1.msra.mxu0 0.0
      %2451 = vmatprep.subr.mxu0 0.0
      %2452 = vmatpush1.msra.mxu0 0.0
      %2453 = vmatprep.subr.mxu0 0.0
      %2454 = vmatpush1.msra.mxu0 0.0
      %2455 = vmatprep.subr.mxu0 0.0
      %2456 = vmatpush1.msra.mxu0 0.0
      %2457 = vmatprep.subr.mxu0 0.0
      %2458 = vmatpush1.msra.mxu0 0.0
      %2459 = vmatprep.subr.mxu0 0.0
      %2460 = vmatpush1.msra.mxu0 0.0
      %2461 = vmatprep.subr.mxu0 0.0
      %2462 = vmatpush1.msra.mxu0 0.0
      %2463 = vmatprep.subr.mxu0 0.0
      %2464 = vmatpush1.msra.mxu0 0.0
      %2465 = vmatprep.subr.mxu0 0.0
      %2466 = vmatpush1.msra.mxu0 0.0
      %2467 = vmatprep.subr.mxu0 0.0
      %2468 = vmatpush1.msra.mxu0 0.0
      %2469 = vmatprep.subr.mxu0 0.0
      %2470 = vmatpush1.msra.mxu0 0.0
      %2471 = vmatprep.subr.mxu0 0.0
      %2472 = vmatpush1.msra.mxu0 0.0
      %2473 = vmatprep.subr.mxu0 0.0
      %2474 = vmatpush1.msra.mxu0 0.0
      %2475 = vmatprep.subr.mxu0 0.0
      %2476 = vmatpush1.msra.mxu0 0.0
      %2477 = vmatprep.subr.mxu0 0.0
      %2478 = vmatpush1.msra.mxu0 0.0
      %2479 = vmatprep.subr.mxu0 0.0
      %2480 = vmatpush1.msra.mxu0 0.0
      %2481 = vmatprep.mubr.f32.mxu0 0.0
      %2482 = vmatmul.mubr.f32.gmra.mrb[0].mxu0 %v2273
      %v2483 = vpop.f32.mrb[0].mxu0
      %v2484 = vadd.f32 0.0, %v2483
      %v2485 = vpop.f32.mrb[0].mxu0
      %v2486 = vadd.f32 0.0, %v2485
      %2487 = vdwg.mxu0
      %2488 = vmatprep.subr.mxu0 %v2198
      %2489 = vmatpush1.msra.mxu0 %v2197
      %2490 = vmatprep.subr.mxu0 %v2208
      %2491 = vmatpush1.msra.mxu0 %v2207
      %2492 = vmatprep.subr.mxu0 %v2218
      %2493 = vmatpush1.msra.mxu0 %v2217
      %2494 = vmatprep.subr.mxu0 %v2228
      %2495 = vmatpush1.msra.mxu0 %v2227
      %2496 = vmatprep.subr.mxu0 %v2238
      %2497 = vmatpush1.msra.mxu0 %v2237
      %2498 = vmatprep.subr.mxu0 %v2248
      %2499 = vmatpush1.msra.mxu0 %v2247
      %2500 = vmatprep.subr.mxu0 %v2258
      %2501 = vmatpush1.msra.mxu0 %v2257
      %2502 = vmatprep.subr.mxu0 %v2268
      %2503 = vmatpush1.msra.mxu0 %v2267
      %2504 = vmatprep.subr.mxu0 0.0
      %2505 = vmatpush1.msra.mxu0 0.0
      %2506 = vmatprep.subr.mxu0 0.0
      %2507 = vmatpush1.msra.mxu0 0.0
      %2508 = vmatprep.subr.mxu0 0.0
      %2509 = vmatpush1.msra.mxu0 0.0
      %2510 = vmatprep.subr.mxu0 0.0
      %2511 = vmatpush1.msra.mxu0 0.0
      %2512 = vmatprep.subr.mxu0 0.0
      %2513 = vmatpush1.msra.mxu0 0.0
      %2514 = vmatprep.subr.mxu0 0.0
      %2515 = vmatpush1.msra.mxu0 0.0
      %2516 = vmatprep.subr.mxu0 0.0
      %2517 = vmatpush1.msra.mxu0 0.0
      %2518 = vmatprep.subr.mxu0 0.0
      %2519 = vmatpush1.msra.mxu0 0.0
      %2520 = vmatprep.subr.mxu0 0.0
      %2521 = vmatpush1.msra.mxu0 0.0
      %2522 = vmatprep.subr.mxu0 0.0
      %2523 = vmatpush1.msra.mxu0 0.0
      %2524 = vmatprep.subr.mxu0 0.0
      %2525 = vmatpush1.msra.mxu0 0.0
      %2526 = vmatprep.subr.mxu0 0.0
      %2527 = vmatpush1.msra.mxu0 0.0
      %2528 = vmatprep.subr.mxu0 0.0
      %2529 = vmatpush1.msra.mxu0 0.0
      %2530 = vmatprep.subr.mxu0 0.0
      %2531 = vmatpush1.msra.mxu0 0.0
      %2532 = vmatprep.subr.mxu0 0.0
      %2533 = vmatpush1.msra.mxu0 0.0
      %2534 = vmatprep.subr.mxu0 0.0
      %2535 = vmatpush1.msra.mxu0 0.0
      %2536 = vmatprep.subr.mxu0 0.0
      %2537 = vmatpush1.msra.mxu0 0.0
      %2538 = vmatprep.subr.mxu0 0.0
      %2539 = vmatpush1.msra.mxu0 0.0
      %2540 = vmatprep.subr.mxu0 0.0
      %2541 = vmatpush1.msra.mxu0 0.0
      %2542 = vmatprep.subr.mxu0 0.0
      %2543 = vmatpush1.msra.mxu0 0.0
      %2544 = vmatprep.subr.mxu0 0.0
      %2545 = vmatpush1.msra.mxu0 0.0
      %2546 = vmatprep.subr.mxu0 0.0
      %2547 = vmatpush1.msra.mxu0 0.0
      %2548 = vmatprep.subr.mxu0 0.0
      %2549 = vmatpush1.msra.mxu0 0.0
      %2550 = vmatprep.subr.mxu0 0.0
      %2551 = vmatpush1.msra.mxu0 0.0
      %2552 = vmatprep.mubr.f32.mxu0 0.0
      %2553 = vmatmul.mubr.f32.gmra.mrb[0].mxu0 %v2273
      %v2554 = vpop.f32.mrb[0].mxu0
      %v2555 = vadd.f32 0.0, %v2554
      %v2556 = vpop.f32.mrb[0].mxu0
      %v2557 = vadd.f32 0.0, %v2556
      %2558 = vdwg.mxu0
      %2559 = vmatprep.subr.mxu0 %v2200
      %2560 = vmatpush1.msra.mxu0 %v2199
      %2561 = vmatprep.subr.mxu0 %v2210
      %2562 = vmatpush1.msra.mxu0 %v2209
      %2563 = vmatprep.subr.mxu0 %v2220
      %2564 = vmatpush1.msra.mxu0 %v2219
      %2565 = vmatprep.subr.mxu0 %v2230
      %2566 = vmatpush1.msra.mxu0 %v2229
      %2567 = vmatprep.subr.mxu0 %v2240
      %2568 = vmatpush1.msra.mxu0 %v2239
      %2569 = vmatprep.subr.mxu0 %v2250
      %2570 = vmatpush1.msra.mxu0 %v2249
      %2571 = vmatprep.subr.mxu0 %v2260
      %2572 = vmatpush1.msra.mxu0 %v2259
      %2573 = vmatprep.subr.mxu0 %v2270
      %2574 = vmatpush1.msra.mxu0 %v2269
      %2575 = vmatprep.subr.mxu0 0.0
      %2576 = vmatpush1.msra.mxu0 0.0
      %2577 = vmatprep.subr.mxu0 0.0
      %2578 = vmatpush1.msra.mxu0 0.0
      %2579 = vmatprep.subr.mxu0 0.0
      %2580 = vmatpush1.msra.mxu0 0.0
      %2581 = vmatprep.subr.mxu0 0.0
      %2582 = vmatpush1.msra.mxu0 0.0
      %2583 = vmatprep.subr.mxu0 0.0
      %2584 = vmatpush1.msra.mxu0 0.0
      %2585 = vmatprep.subr.mxu0 0.0
      %2586 = vmatpush1.msra.mxu0 0.0
      %2587 = vmatprep.subr.mxu0 0.0
      %2588 = vmatpush1.msra.mxu0 0.0
      %2589 = vmatprep.subr.mxu0 0.0
      %2590 = vmatpush1.msra.mxu0 0.0
      %2591 = vmatprep.subr.mxu0 0.0
      %2592 = vmatpush1.msra.mxu0 0.0
      %2593 = vmatprep.subr.mxu0 0.0
      %2594 = vmatpush1.msra.mxu0 0.0
      %2595 = vmatprep.subr.mxu0 0.0
      %2596 = vmatpush1.msra.mxu0 0.0
      %2597 = vmatprep.subr.mxu0 0.0
      %2598 = vmatpush1.msra.mxu0 0.0
      %2599 = vmatprep.subr.mxu0 0.0
      %2600 = vmatpush1.msra.mxu0 0.0
      %2601 = vmatprep.subr.mxu0 0.0
      %2602 = vmatpush1.msra.mxu0 0.0
      %2603 = vmatprep.subr.mxu0 0.0
      %2604 = vmatpush1.msra.mxu0 0.0
      %2605 = vmatprep.subr.mxu0 0.0
      %2606 = vmatpush1.msra.mxu0 0.0
      %2607 = vmatprep.subr.mxu0 0.0
      %2608 = vmatpush1.msra.mxu0 0.0
      %2609 = vmatprep.subr.mxu0 0.0
      %2610 = vmatpush1.msra.mxu0 0.0
      %2611 = vmatprep.subr.mxu0 0.0
      %2612 = vmatpush1.msra.mxu0 0.0
      %2613 = vmatprep.subr.mxu0 0.0
      %2614 = vmatpush1.msra.mxu0 0.0
      %2615 = vmatprep.subr.mxu0 0.0
      %2616 = vmatpush1.msra.mxu0 0.0
      %2617 = vmatprep.subr.mxu0 0.0
      %2618 = vmatpush1.msra.mxu0 0.0
      %2619 = vmatprep.subr.mxu0 0.0
      %2620 = vmatpush1.msra.mxu0 0.0
      %2621 = vmatprep.subr.mxu0 0.0
      %2622 = vmatpush1.msra.mxu0 0.0
      %2623 = vmatprep.mubr.f32.mxu0 0.0
      %2624 = vmatmul.mubr.f32.gmra.mrb[0].mxu0 %v2273
      %v2625 = vpop.f32.mrb[0].mxu0
      %v2626 = vadd.f32 0.0, %v2625
      %v2627 = vpop.f32.mrb[0].mxu0
      %v2628 = vadd.f32 0.0, %v2627
      %2629 = vdwg.mxu0
      %v2640 = vcombine.low %v2342, %v2344
      %v2641 = vcombine.low %v2413, %v2415
      %v2642 = vcombine.low %v2484, %v2486
      %v2643 = vcombine.low %v2555, %v2557
      %v2645 = vunpack.c.l.s4 1966171168
      %v2646 = vunpack.c.0.s8 %v2645
      %v2647 = vlaneseq
      %v2648 = vshrl.u32 %v2647, 7
      %v2649 = vsub.s32 %v2646, %v2648
      %v2650 = vrot.slane %v2640, %v2649
      %v2652 = vunpack.c.l.s4 1966171168
      %v2653 = vunpack.c.0.s8 %v2652
      %v2654 = vlaneseq
      %v2655 = vshrl.u32 %v2654, 7
      %v2656 = vsub.s32 %v2653, %v2655
      %v2657 = vrot.slane %v2641, %v2656
      %v2659 = vunpack.c.l.s4 1966171168
      %v2660 = vunpack.c.0.s8 %v2659
      %v2661 = vlaneseq
      %v2662 = vshrl.u32 %v2661, 7
      %v2663 = vsub.s32 %v2660, %v2662
      %v2664 = vrot.slane %v2642, %v2663
      %v2666 = vunpack.c.l.s4 1966171168
      %v2667 = vunpack.c.0.s8 %v2666
      %v2668 = vlaneseq
      %v2669 = vshrl.u32 %v2668, 7
      %v2670 = vsub.s32 %v2667, %v2669
      %v2671 = vrot.slane %v2643, %v2670
      %v2672 = vcombine.low %v2650, %v2657
      %v2673 = vcombine.low %v2664, %v2671
      %v2675 = vunpack.c.l.s4 1966171168
      %v2676 = vunpack.c.0.s8 %v2675
      %v2677 = vlaneseq
      %v2678 = vshrl.u32 %v2677, 7
      %v2679 = vsub.s32 %v2676, %v2678
      %v2680 = vrot.slane %v2672, %v2679
      %v2682 = vunpack.c.l.s4 1966171168
      %v2683 = vunpack.c.0.s8 %v2682
      %v2684 = vlaneseq
      %v2685 = vshrl.u32 %v2684, 7
      %v2686 = vsub.s32 %v2683, %v2685
      %v2687 = vrot.slane %v2673, %v2686
      %v2688 = vcombine.low %v2680, %v2687
      %v2689 = vcombine.low %v2626, %v2628
      %v2691 = vunpack.c.l.s4 1966171168
      %v2692 = vunpack.c.0.s8 %v2691
      %v2693 = vlaneseq
      %v2694 = vshrl.u32 %v2693, 7
      %v2695 = vsub.s32 %v2692, %v2694
      %v2696 = vrot.slane %v2689, %v2695
      %v2698 = vunpack.c.l.s4 1966171168
      %v2699 = vunpack.c.0.s8 %v2698
      %v2700 = vlaneseq
      %v2701 = vshrl.u32 %v2700, 7
      %v2702 = vsub.s32 %v2699, %v2701
      %v2703 = vrot.slane %v2696, %v2702
      %2706 = vst [vmem:[%s303] sm:$0xff] %v2688
      %v2707 = vlaneseq
      %vm2708 = vcmp.ge.s32.totalorder %v2707, 0
      %vm2709 = vcmp.lt.s32.totalorder %v2707, 256
      %vm2710 = vmand %vm2708, %vm2709
      %2711 = vst.msk [vmem:[%s303 + $0x8] sm:$0x3] %vm2710, %v2703
      %p2712 = scmp.lt.s32.totalorder %s19, 1
      %s2713 = scalar_select %p2712, %s19, 1
      %s2714 = smul.addr %s2713, 10
      %s2715 = scalar_lea.vmem %s8, %s2714
      // Predicated region
      $region53: #{efficient_lightgbm_forward.1} parent=51 // pred_check
        %p2716 = pneg %p210
      $region54: #{efficient_lightgbm_forward.1} parent=51 // pred_check_branch
        %2718 = sbr.rel (%p2716) target = $region56
      $region55: #{efficient_lightgbm_forward.1} parent=51 // pred_region
        _
      $region56: #{efficient_lightgbm_forward.1} parent=51 // pred_fallthru
        _
    $region52: #{efficient_lightgbm_forward.1} parent=5 // pred_fallthru
      _
    %p2719 = scmp.le.s32.totalorder 2, %s14
    // Predicated region
    $region57: #{efficient_lightgbm_forward.1} parent=5 // pred_check
      %p2720 = pneg %p2719
    $region58: #{efficient_lightgbm_forward.1} parent=5 // pred_check_branch
      %2722 = sbr.rel (%p2720) target = $region60
    $region59: #{efficient_lightgbm_forward.1} parent=5 // pred_region
      %s2723 = ssub.s32 %s14, 2
      // Predicated region
      $region61: #{efficient_lightgbm_forward.1} parent=59 // pred_check
        %p2724 = pneg %p216
      $region62: #{efficient_lightgbm_forward.1} parent=59 // pred_check_branch
        %2726 = sbr.rel (%p2724) target = $region64
      $region63: #{efficient_lightgbm_forward.1} parent=59 // pred_region
        %p2727 = scmp.lt.s32.totalorder %s20, 1
        %s2728 = scalar_select %p2727, %s20, 1
        %s2729 = smul.addr %s2728, 10
        %s2730 = scalar_lea.vmem %s8, %s2729
      $region64: #{efficient_lightgbm_forward.1} parent=59 // pred_fallthru
        _
    $region60: #{efficient_lightgbm_forward.1} parent=5 // pred_fallthru
      _
  $region6: #{efficient_lightgbm_forward.1} parent=0 // loop_footer
    %s18 = sadd.s32 1, %s14
  $region7: #{efficient_lightgbm_forward.1} parent=0 // loop_footer_branch
    %13 = sbr.rel target = $region3
  $region8: #{efficient_lightgbm_forward.1} parent=0 // loop_exit
    _

</llo_original>
